<compile_context>
chip_gen: v5e
topology: v5e:2x2
jax: 0.10.0
libtpu: 0.0.40
codegen_flags: <defaults>
</compile_context>

<pallas_src>
import functools

import jax
import jax.numpy as jnp
import numpy as np
from jax.experimental import pallas as pl
from jax.experimental.pallas import tpu as pltpu


# ----------------------------- Pallas kernel --------------------------------
def base_model_kernel(
    q_ref,            # (T*B, q_dim)  time-major, flattened question sequence
    v_ref,            # (B, v_dim)
    wi_ref, bi_ref,   # fused GRU input->hidden  weights (q_dim, 3H), bias (1, 3H)  [r|z|n]
    wh_ref, bh_ref,   # fused GRU hidden->hidden weights (H, 3H),     bias (1, 3H)  [r|z|n]
    wq_ref, bq_ref,   # q_net   Linear (H, H), (1, H)
    wv_ref, bv_ref,   # v_net   Linear (v_dim, H), (1, H)
    w1_ref, b1_ref,   # classifier Linear1 (H, 2H), (1, 2H)
    w2_ref, b2_ref,   # classifier Linear2 (2H, C), (1, C)
    out_ref,          # (B, C)
    *, batch: int,
):
    B = batch
    TB = q_ref.shape[0]
    T = TB // B
    H = wh_ref.shape[0]
    f32 = jnp.float32

    # --- Hoisted input projection (independent of h -> off the serial path) ---
    # (T*B, q_dim) @ (q_dim, 3H) + bi  ->  (T*B, 3H), columns laid out [r | z | n]
    x_all = (
        jnp.dot(q_ref[...].astype(f32), wi_ref[...], preferred_element_type=f32)
        + bi_ref[...]
    )

    # --- Sequential GRU recurrence, fully unrolled (T small & static) ---------
    # PyTorch GRU cell:
    #   r = sigmoid(x Wir + bir + h Whr + bhr)
    #   z = sigmoid(x Wiz + biz + h Whz + bhz)
    #   n = tanh  (x Win + bin + r * (h Whn + bhn))
    #   h' = (1 - z) * n + z * h
    h = jnp.zeros((B, H), f32)
    for t in range(T):
        xg = x_all[t * B:(t + 1) * B, :]                               # (B, 3H), static slice
        hg = jnp.dot(h, wh_ref[...], preferred_element_type=f32) + bh_ref[...]
        r = jax.nn.sigmoid(xg[:, 0 * H:1 * H] + hg[:, 0 * H:1 * H])
        z = jax.nn.sigmoid(xg[:, 1 * H:2 * H] + hg[:, 1 * H:2 * H])
        n = jnp.tanh(xg[:, 2 * H:3 * H] + r * hg[:, 2 * H:3 * H])
        h = (1.0 - z) * n + z * h

    # --- FC nets, elementwise fusion, classifier ------------------------------
    q_repr = jnp.maximum(
        jnp.dot(h, wq_ref[...], preferred_element_type=f32) + bq_ref[...], 0.0)
    v_repr = jnp.maximum(
        jnp.dot(v_ref[...].astype(f32), wv_ref[...], preferred_element_type=f32)
        + bv_ref[...], 0.0)
    joint = q_repr * v_repr
    # TODO(synk): ans_gen_dropout=0.5 is a no-op at inference; not implemented as a random mask.
    hid = jnp.maximum(
        jnp.dot(joint, w1_ref[...], preferred_element_type=f32) + b1_ref[...], 0.0)
    logits = jnp.dot(hid, w2_ref[...], preferred_element_type=f32) + b2_ref[...]
    out_ref[...] = logits.astype(out_ref.dtype)


# ------------------------------- wrapper -------------------------------------
def base_model_forward(v, q, params, num_classes):
    B, T, q_dim = q.shape

    # Fuse GRU gate weights/biases along the output dim: [r | z | n].
    wi = jnp.concatenate([params["wir"], params["wiz"], params["win"]], axis=1)
    bi = jnp.concatenate([params["bir"], params["biz"], params["bin"]], axis=1)
    wh = jnp.concatenate([params["whr"], params["whz"], params["whn"]], axis=1)
    bh = jnp.concatenate([params["bhr"], params["bhz"], params["bhn"]], axis=1)

    # Time-major then flatten, so time step t occupies the contiguous row block
    # [t*B, (t+1)*B) of the hoisted input-projection matmul.
    q_flat = jnp.transpose(q, (1, 0, 2)).reshape(T * B, q_dim)

    operands = (
        q_flat, v, wi, bi, wh, bh,
        params["wq"], params["bq"], params["wv"], params["bv"],
        params["w1"], params["b1"], params["w2"], params["b2"],
    )

    kernel = functools.partial(base_model_kernel, batch=B)
    return pl.pallas_call(
        kernel,
        out_shape=jax.ShapeDtypeStruct((B, num_classes), jnp.float32),
        in_specs=[pl.BlockSpec(memory_space=pltpu.MemorySpace.VMEM)] * len(operands),
        out_specs=pl.BlockSpec(memory_space=pltpu.MemorySpace.VMEM),
    )(*operands)


# --------------------------- pure-JAX reference -------------------------------
def reference_forward(v, q, p):
    B, T, _ = q.shape
    H = p["wq"].shape[0]
    h = jnp.zeros((B, H), jnp.float32)
    for t in range(T):
        x = q[:, t, :]
        r = jax.nn.sigmoid(x @ p["wir"] + p["bir"] + h @ p["whr"] + p["bhr"])
        z = jax.nn.sigmoid(x @ p["wiz"] + p["biz"] + h @ p["whz"] + p["bhz"])
        n = jnp.tanh(x @ p["win"] + p["bin"] + r * (h @ p["whn"] + p["bhn"]))
        h = (1.0 - z) * n + z * h
    q_repr = jax.nn.relu(h @ p["wq"] + p["bq"])
    v_repr = jax.nn.relu(v @ p["wv"] + p["bv"])
    joint = q_repr * v_repr
    hid = jax.nn.relu(joint @ p["w1"] + p["b1"])
    return hid @ p["w2"] + p["b2"]


# ------------------------------ param init ------------------------------------
def init_params(key, q_dim, v_dim, num_hid, num_classes):
    H = num_hid

    def uni(k, shape, fan_in):
        bound = 1.0 / np.sqrt(fan_in)
        return jax.random.uniform(k, shape, jnp.float32, -bound, bound)

    names_shapes = {
        "wir": ((q_dim, H), q_dim), "wiz": ((q_dim, H), q_dim), "win": ((q_dim, H), q_dim),
        "whr": ((H, H), H), "whz": ((H, H), H), "whn": ((H, H), H),
        "bir": ((1, H), H), "biz": ((1, H), H), "bin": ((1, H), H),
        "bhr": ((1, H), H), "bhz": ((1, H), H), "bhn": ((1, H), H),
        "wq": ((H, H), H), "bq": ((1, H), H),
        "wv": ((v_dim, H), v_dim), "bv": ((1, H), v_dim),
        "w1": ((H, 2 * H), H), "b1": ((1, 2 * H), H),
        "w2": ((2 * H, num_classes), 2 * H), "b2": ((1, num_classes), 2 * H),
    }
    keys = jax.random.split(key, len(names_shapes))
    return {name: uni(k, shape, fan_in)
            for k, (name, (shape, fan_in)) in zip(keys, names_shapes.items())}


# --------------------------------- main ---------------------------------------
if __name__ == "__main__":
    # Sublane/lane aligned small shapes: B=8 (full f32 sublane), H/C multiples of 128.
    B, T = 8, 8
    q_dim, v_dim, num_hid, num_classes = 128, 128, 128, 128

    root = jax.random.PRNGKey(0)
    k_v, k_q, k_p = jax.random.split(root, 3)

    v = jax.random.normal(k_v, (B, v_dim), jnp.float32)
    q = jax.random.normal(k_q, (B, T, q_dim), jnp.float32)
    params = init_params(k_p, q_dim, v_dim, num_hid, num_classes)

    fwd = jax.jit(functools.partial(base_model_forward, num_classes=num_classes))
    logits = fwd(v, q, params)
    jax.block_until_ready(logits)

    ref = reference_forward(v, q, params)
    np.testing.assert_allclose(np.asarray(logits), np.asarray(ref), rtol=2e-3, atol=2e-3)

    print("KERNEL_OK")
</pallas_src>

<mosaic_0001>
module attributes {stable_mosaic.version = 11 : i64} {
  func.func @base_model_kernel(%arg0: memref<64x128xf32, #tpu.memory_space<vmem>>, %arg1: memref<8x128xf32, #tpu.memory_space<vmem>>, %arg2: memref<128x384xf32, #tpu.memory_space<vmem>>, %arg3: memref<1x384xf32, #tpu.memory_space<vmem>>, %arg4: memref<128x384xf32, #tpu.memory_space<vmem>>, %arg5: memref<1x384xf32, #tpu.memory_space<vmem>>, %arg6: memref<128x128xf32, #tpu.memory_space<vmem>>, %arg7: memref<1x128xf32, #tpu.memory_space<vmem>>, %arg8: memref<128x128xf32, #tpu.memory_space<vmem>>, %arg9: memref<1x128xf32, #tpu.memory_space<vmem>>, %arg10: memref<128x256xf32, #tpu.memory_space<vmem>>, %arg11: memref<1x256xf32, #tpu.memory_space<vmem>>, %arg12: memref<256x128xf32, #tpu.memory_space<vmem>>, %arg13: memref<1x128xf32, #tpu.memory_space<vmem>>, %arg14: memref<8x128xf32, #tpu.memory_space<vmem>>) attributes {dimension_semantics = [], scalar_prefetch = 0 : i64, scratch_operands = 0 : i64, tpu.core_type = #tpu.core_type<tc>} {
    %c0 = arith.constant 0 : index
    %c0_0 = arith.constant 0 : index
    %0 = vector.load %arg0[%c0, %c0_0] : memref<64x128xf32, #tpu.memory_space<vmem>>, vector<64x128xf32>
    %c0_1 = arith.constant 0 : index
    %c0_2 = arith.constant 0 : index
    %1 = vector.load %arg2[%c0_1, %c0_2] : memref<128x384xf32, #tpu.memory_space<vmem>>, vector<128x384xf32>
    %cst = arith.constant dense<0.000000e+00> : vector<64x384xf32>
    %2 = tpu.matmul %0, %1, %cst {dimension_numbers = #tpu.dot_dimension_numbers<[1], [0], [0], [1], [0, 0, 1, 1], [], []>} : vector<64x128xf32>, vector<128x384xf32>, vector<64x384xf32> -> vector<64x384xf32>
    %c0_3 = arith.constant 0 : index
    %c0_4 = arith.constant 0 : index
    %3 = vector.load %arg3[%c0_3, %c0_4] : memref<1x384xf32, #tpu.memory_space<vmem>>, vector<1x384xf32>
    %4 = vector.broadcast %3 : vector<1x384xf32> to vector<64x384xf32>
    %5 = arith.addf %2, %4 : vector<64x384xf32>
    %cst_5 = arith.constant 0.000000e+00 : f32
    %6 = vector.broadcast %cst_5 : f32 to vector<8x128xf32>
    %7 = vector.extract_strided_slice %5 {offsets = [0, 0], sizes = [8, 384], strides = [1, 1]} : vector<64x384xf32> to vector<8x384xf32>
    %c0_6 = arith.constant 0 : index
    %c0_7 = arith.constant 0 : index
    %8 = vector.load %arg4[%c0_6, %c0_7] : memref<128x384xf32, #tpu.memory_space<vmem>>, vector<128x384xf32>
    %cst_8 = arith.constant dense<0.000000e+00> : vector<8x384xf32>
    %9 = tpu.matmul %6, %8, %cst_8 {dimension_numbers = #tpu.dot_dimension_numbers<[1], [0], [0], [1], [0, 0, 1, 1], [], []>} : vector<8x128xf32>, vector<128x384xf32>, vector<8x384xf32> -> vector<8x384xf32>
    %c0_9 = arith.constant 0 : index
    %c0_10 = arith.constant 0 : index
    %10 = vector.load %arg5[%c0_9, %c0_10] : memref<1x384xf32, #tpu.memory_space<vmem>>, vector<1x384xf32>
    %11 = vector.broadcast %10 : vector<1x384xf32> to vector<8x384xf32>
    %12 = arith.addf %9, %11 : vector<8x384xf32>
    %13 = vector.extract_strided_slice %7 {offsets = [0, 0], sizes = [8, 128], strides = [1, 1]} : vector<8x384xf32> to vector<8x128xf32>
    %14 = vector.extract_strided_slice %12 {offsets = [0, 0], sizes = [8, 128], strides = [1, 1]} : vector<8x384xf32> to vector<8x128xf32>
    %15 = arith.addf %13, %14 : vector<8x128xf32>
    %16 = arith.negf %15 : vector<8x128xf32>
    %17 = math.exp %16 : vector<8x128xf32>
    %cst_11 = arith.constant 1.000000e+00 : f32
    %18 = vector.broadcast %cst_11 : f32 to vector<8x128xf32>
    %19 = arith.addf %18, %17 : vector<8x128xf32>
    %20 = arith.divf %18, %19 : vector<8x128xf32>
    %21 = vector.extract_strided_slice %7 {offsets = [0, 128], sizes = [8, 128], strides = [1, 1]} : vector<8x384xf32> to vector<8x128xf32>
    %22 = vector.extract_strided_slice %12 {offsets = [0, 128], sizes = [8, 128], strides = [1, 1]} : vector<8x384xf32> to vector<8x128xf32>
    %23 = arith.addf %21, %22 : vector<8x128xf32>
    %24 = arith.negf %23 : vector<8x128xf32>
    %25 = math.exp %24 : vector<8x128xf32>
    %cst_12 = arith.constant 1.000000e+00 : f32
    %26 = vector.broadcast %cst_12 : f32 to vector<8x128xf32>
    %27 = arith.addf %26, %25 : vector<8x128xf32>
    %28 = arith.divf %26, %27 : vector<8x128xf32>
    %29 = vector.extract_strided_slice %7 {offsets = [0, 256], sizes = [8, 128], strides = [1, 1]} : vector<8x384xf32> to vector<8x128xf32>
    %30 = vector.extract_strided_slice %12 {offsets = [0, 256], sizes = [8, 128], strides = [1, 1]} : vector<8x384xf32> to vector<8x128xf32>
    %31 = arith.mulf %20, %30 : vector<8x128xf32>
    %32 = arith.addf %29, %31 : vector<8x128xf32>
    %33 = math.tanh %32 : vector<8x128xf32>
    %cst_13 = arith.constant 1.000000e+00 : f32
    %34 = vector.broadcast %cst_13 : f32 to vector<8x128xf32>
    %35 = arith.subf %34, %28 : vector<8x128xf32>
    %36 = arith.mulf %35, %33 : vector<8x128xf32>
    %37 = arith.mulf %28, %6 : vector<8x128xf32>
    %38 = arith.addf %36, %37 : vector<8x128xf32>
    %39 = vector.extract_strided_slice %5 {offsets = [8, 0], sizes = [8, 384], strides = [1, 1]} : vector<64x384xf32> to vector<8x384xf32>
    %c0_14 = arith.constant 0 : index
    %c0_15 = arith.constant 0 : index
    %40 = vector.load %arg4[%c0_14, %c0_15] : memref<128x384xf32, #tpu.memory_space<vmem>>, vector<128x384xf32>
    %cst_16 = arith.constant dense<0.000000e+00> : vector<8x384xf32>
    %41 = tpu.matmul %38, %40, %cst_16 {dimension_numbers = #tpu.dot_dimension_numbers<[1], [0], [0], [1], [0, 0, 1, 1], [], []>} : vector<8x128xf32>, vector<128x384xf32>, vector<8x384xf32> -> vector<8x384xf32>
    %c0_17 = arith.constant 0 : index
    %c0_18 = arith.constant 0 : index
    %42 = vector.load %arg5[%c0_17, %c0_18] : memref<1x384xf32, #tpu.memory_space<vmem>>, vector<1x384xf32>
    %43 = vector.broadcast %42 : vector<1x384xf32> to vector<8x384xf32>
    %44 = arith.addf %41, %43 : vector<8x384xf32>
    %45 = vector.extract_strided_slice %39 {offsets = [0, 0], sizes = [8, 128], strides = [1, 1]} : vector<8x384xf32> to vector<8x128xf32>
    %46 = vector.extract_strided_slice %44 {offsets = [0, 0], sizes = [8, 128], strides = [1, 1]} : vector<8x384xf32> to vector<8x128xf32>
    %47 = arith.addf %45, %46 : vector<8x128xf32>
    %48 = arith.negf %47 : vector<8x128xf32>
    %49 = math.exp %48 : vector<8x128xf32>
    %cst_19 = arith.constant 1.000000e+00 : f32
    %50 = vector.broadcast %cst_19 : f32 to vector<8x128xf32>
    %51 = arith.addf %50, %49 : vector<8x128xf32>
    %52 = arith.divf %50, %51 : vector<8x128xf32>
    %53 = vector.extract_strided_slice %39 {offsets = [0, 128], sizes = [8, 128], strides = [1, 1]} : vector<8x384xf32> to vector<8x128xf32>
    %54 = vector.extract_strided_slice %44 {offsets = [0, 128], sizes = [8, 128], strides = [1, 1]} : vector<8x384xf32> to vector<8x128xf32>
    %55 = arith.addf %53, %54 : vector<8x128xf32>
    %56 = arith.negf %55 : vector<8x128xf32>
    %57 = math.exp %56 : vector<8x128xf32>
    %cst_20 = arith.constant 1.000000e+00 : f32
    %58 = vector.broadcast %cst_20 : f32 to vector<8x128xf32>
    %59 = arith.addf %58, %57 : vector<8x128xf32>
    %60 = arith.divf %58, %59 : vector<8x128xf32>
    %61 = vector.extract_strided_slice %39 {offsets = [0, 256], sizes = [8, 128], strides = [1, 1]} : vector<8x384xf32> to vector<8x128xf32>
    %62 = vector.extract_strided_slice %44 {offsets = [0, 256], sizes = [8, 128], strides = [1, 1]} : vector<8x384xf32> to vector<8x128xf32>
    %63 = arith.mulf %52, %62 : vector<8x128xf32>
    %64 = arith.addf %61, %63 : vector<8x128xf32>
    %65 = math.tanh %64 : vector<8x128xf32>
    %cst_21 = arith.constant 1.000000e+00 : f32
    %66 = vector.broadcast %cst_21 : f32 to vector<8x128xf32>
    %67 = arith.subf %66, %60 : vector<8x128xf32>
    %68 = arith.mulf %67, %65 : vector<8x128xf32>
    %69 = arith.mulf %60, %38 : vector<8x128xf32>
    %70 = arith.addf %68, %69 : vector<8x128xf32>
    %71 = vector.extract_strided_slice %5 {offsets = [16, 0], sizes = [8, 384], strides = [1, 1]} : vector<64x384xf32> to vector<8x384xf32>
    %c0_22 = arith.constant 0 : index
    %c0_23 = arith.constant 0 : index
    %72 = vector.load %arg4[%c0_22, %c0_23] : memref<128x384xf32, #tpu.memory_space<vmem>>, vector<128x384xf32>
    %cst_24 = arith.constant dense<0.000000e+00> : vector<8x384xf32>
    %73 = tpu.matmul %70, %72, %cst_24 {dimension_numbers = #tpu.dot_dimension_numbers<[1], [0], [0], [1], [0, 0, 1, 1], [], []>} : vector<8x128xf32>, vector<128x384xf32>, vector<8x384xf32> -> vector<8x384xf32>
    %c0_25 = arith.constant 0 : index
    %c0_26 = arith.constant 0 : index
    %74 = vector.load %arg5[%c0_25, %c0_26] : memref<1x384xf32, #tpu.memory_space<vmem>>, vector<1x384xf32>
    %75 = vector.broadcast %74 : vector<1x384xf32> to vector<8x384xf32>
    %76 = arith.addf %73, %75 : vector<8x384xf32>
    %77 = vector.extract_strided_slice %71 {offsets = [0, 0], sizes = [8, 128], strides = [1, 1]} : vector<8x384xf32> to vector<8x128xf32>
    %78 = vector.extract_strided_slice %76 {offsets = [0, 0], sizes = [8, 128], strides = [1, 1]} : vector<8x384xf32> to vector<8x128xf32>
    %79 = arith.addf %77, %78 : vector<8x128xf32>
    %80 = arith.negf %79 : vector<8x128xf32>
    %81 = math.exp %80 : vector<8x128xf32>
    %cst_27 = arith.constant 1.000000e+00 : f32
    %82 = vector.broadcast %cst_27 : f32 to vector<8x128xf32>
    %83 = arith.addf %82, %81 : vector<8x128xf32>
    %84 = arith.divf %82, %83 : vector<8x128xf32>
    %85 = vector.extract_strided_slice %71 {offsets = [0, 128], sizes = [8, 128], strides = [1, 1]} : vector<8x384xf32> to vector<8x128xf32>
    %86 = vector.extract_strided_slice %76 {offsets = [0, 128], sizes = [8, 128], strides = [1, 1]} : vector<8x384xf32> to vector<8x128xf32>
    %87 = arith.addf %85, %86 : vector<8x128xf32>
    %88 = arith.negf %87 : vector<8x128xf32>
    %89 = math.exp %88 : vector<8x128xf32>
    %cst_28 = arith.constant 1.000000e+00 : f32
    %90 = vector.broadcast %cst_28 : f32 to vector<8x128xf32>
    %91 = arith.addf %90, %89 : vector<8x128xf32>
    %92 = arith.divf %90, %91 : vector<8x128xf32>
    %93 = vector.extract_strided_slice %71 {offsets = [0, 256], sizes = [8, 128], strides = [1, 1]} : vector<8x384xf32> to vector<8x128xf32>
    %94 = vector.extract_strided_slice %76 {offsets = [0, 256], sizes = [8, 128], strides = [1, 1]} : vector<8x384xf32> to vector<8x128xf32>
    %95 = arith.mulf %84, %94 : vector<8x128xf32>
    %96 = arith.addf %93, %95 : vector<8x128xf32>
    %97 = math.tanh %96 : vector<8x128xf32>
    %cst_29 = arith.constant 1.000000e+00 : f32
    %98 = vector.broadcast %cst_29 : f32 to vector<8x128xf32>
    %99 = arith.subf %98, %92 : vector<8x128xf32>
    %100 = arith.mulf %99, %97 : vector<8x128xf32>
    %101 = arith.mulf %92, %70 : vector<8x128xf32>
    %102 = arith.addf %100, %101 : vector<8x128xf32>
    %103 = vector.extract_strided_slice %5 {offsets = [24, 0], sizes = [8, 384], strides = [1, 1]} : vector<64x384xf32> to vector<8x384xf32>
    %c0_30 = arith.constant 0 : index
    %c0_31 = arith.constant 0 : index
    %104 = vector.load %arg4[%c0_30, %c0_31] : memref<128x384xf32, #tpu.memory_space<vmem>>, vector<128x384xf32>
    %cst_32 = arith.constant dense<0.000000e+00> : vector<8x384xf32>
    %105 = tpu.matmul %102, %104, %cst_32 {dimension_numbers = #tpu.dot_dimension_numbers<[1], [0], [0], [1], [0, 0, 1, 1], [], []>} : vector<8x128xf32>, vector<128x384xf32>, vector<8x384xf32> -> vector<8x384xf32>
    %c0_33 = arith.constant 0 : index
    %c0_34 = arith.constant 0 : index
    %106 = vector.load %arg5[%c0_33, %c0_34] : memref<1x384xf32, #tpu.memory_space<vmem>>, vector<1x384xf32>
    %107 = vector.broadcast %106 : vector<1x384xf32> to vector<8x384xf32>
    %108 = arith.addf %105, %107 : vector<8x384xf32>
    %109 = vector.extract_strided_slice %103 {offsets = [0, 0], sizes = [8, 128], strides = [1, 1]} : vector<8x384xf32> to vector<8x128xf32>
    %110 = vector.extract_strided_slice %108 {offsets = [0, 0], sizes = [8, 128], strides = [1, 1]} : vector<8x384xf32> to vector<8x128xf32>
    %111 = arith.addf %109, %110 : vector<8x128xf32>
    %112 = arith.negf %111 : vector<8x128xf32>
    %113 = math.exp %112 : vector<8x128xf32>
    %cst_35 = arith.constant 1.000000e+00 : f32
    %114 = vector.broadcast %cst_35 : f32 to vector<8x128xf32>
    %115 = arith.addf %114, %113 : vector<8x128xf32>
    %116 = arith.divf %114, %115 : vector<8x128xf32>
    %117 = vector.extract_strided_slice %103 {offsets = [0, 128], sizes = [8, 128], strides = [1, 1]} : vector<8x384xf32> to vector<8x128xf32>
    %118 = vector.extract_strided_slice %108 {offsets = [0, 128], sizes = [8, 128], strides = [1, 1]} : vector<8x384xf32> to vector<8x128xf32>
    %119 = arith.addf %117, %118 : vector<8x128xf32>
    %120 = arith.negf %119 : vector<8x128xf32>
    %121 = math.exp %120 : vector<8x128xf32>
    %cst_36 = arith.constant 1.000000e+00 : f32
    %122 = vector.broadcast %cst_36 : f32 to vector<8x128xf32>
    %123 = arith.addf %122, %121 : vector<8x128xf32>
    %124 = arith.divf %122, %123 : vector<8x128xf32>
    %125 = vector.extract_strided_slice %103 {offsets = [0, 256], sizes = [8, 128], strides = [1, 1]} : vector<8x384xf32> to vector<8x128xf32>
    %126 = vector.extract_strided_slice %108 {offsets = [0, 256], sizes = [8, 128], strides = [1, 1]} : vector<8x384xf32> to vector<8x128xf32>
    %127 = arith.mulf %116, %126 : vector<8x128xf32>
    %128 = arith.addf %125, %127 : vector<8x128xf32>
    %129 = math.tanh %128 : vector<8x128xf32>
    %cst_37 = arith.constant 1.000000e+00 : f32
    %130 = vector.broadcast %cst_37 : f32 to vector<8x128xf32>
    %131 = arith.subf %130, %124 : vector<8x128xf32>
    %132 = arith.mulf %131, %129 : vector<8x128xf32>
    %133 = arith.mulf %124, %102 : vector<8x128xf32>
    %134 = arith.addf %132, %133 : vector<8x128xf32>
    %135 = vector.extract_strided_slice %5 {offsets = [32, 0], sizes = [8, 384], strides = [1, 1]} : vector<64x384xf32> to vector<8x384xf32>
    %c0_38 = arith.constant 0 : index
    %c0_39 = arith.constant 0 : index
    %136 = vector.load %arg4[%c0_38, %c0_39] : memref<128x384xf32, #tpu.memory_space<vmem>>, vector<128x384xf32>
    %cst_40 = arith.constant dense<0.000000e+00> : vector<8x384xf32>
    %137 = tpu.matmul %134, %136, %cst_40 {dimension_numbers = #tpu.dot_dimension_numbers<[1], [0], [0], [1], [0, 0, 1, 1], [], []>} : vector<8x128xf32>, vector<128x384xf32>, vector<8x384xf32> -> vector<8x384xf32>
    %c0_41 = arith.constant 0 : index
    %c0_42 = arith.constant 0 : index
    %138 = vector.load %arg5[%c0_41, %c0_42] : memref<1x384xf32, #tpu.memory_space<vmem>>, vector<1x384xf32>
    %139 = vector.broadcast %138 : vector<1x384xf32> to vector<8x384xf32>
    %140 = arith.addf %137, %139 : vector<8x384xf32>
    %141 = vector.extract_strided_slice %135 {offsets = [0, 0], sizes = [8, 128], strides = [1, 1]} : vector<8x384xf32> to vector<8x128xf32>
    %142 = vector.extract_strided_slice %140 {offsets = [0, 0], sizes = [8, 128], strides = [1, 1]} : vector<8x384xf32> to vector<8x128xf32>
    %143 = arith.addf %141, %142 : vector<8x128xf32>
    %144 = arith.negf %143 : vector<8x128xf32>
    %145 = math.exp %144 : vector<8x128xf32>
    %cst_43 = arith.constant 1.000000e+00 : f32
    %146 = vector.broadcast %cst_43 : f32 to vector<8x128xf32>
    %147 = arith.addf %146, %145 : vector<8x128xf32>
    %148 = arith.divf %146, %147 : vector<8x128xf32>
    %149 = vector.extract_strided_slice %135 {offsets = [0, 128], sizes = [8, 128], strides = [1, 1]} : vector<8x384xf32> to vector<8x128xf32>
    %150 = vector.extract_strided_slice %140 {offsets = [0, 128], sizes = [8, 128], strides = [1, 1]} : vector<8x384xf32> to vector<8x128xf32>
    %151 = arith.addf %149, %150 : vector<8x128xf32>
    %152 = arith.negf %151 : vector<8x128xf32>
    %153 = math.exp %152 : vector<8x128xf32>
    %cst_44 = arith.constant 1.000000e+00 : f32
    %154 = vector.broadcast %cst_44 : f32 to vector<8x128xf32>
    %155 = arith.addf %154, %153 : vector<8x128xf32>
    %156 = arith.divf %154, %155 : vector<8x128xf32>
    %157 = vector.extract_strided_slice %135 {offsets = [0, 256], sizes = [8, 128], strides = [1, 1]} : vector<8x384xf32> to vector<8x128xf32>
    %158 = vector.extract_strided_slice %140 {offsets = [0, 256], sizes = [8, 128], strides = [1, 1]} : vector<8x384xf32> to vector<8x128xf32>
    %159 = arith.mulf %148, %158 : vector<8x128xf32>
    %160 = arith.addf %157, %159 : vector<8x128xf32>
    %161 = math.tanh %160 : vector<8x128xf32>
    %cst_45 = arith.constant 1.000000e+00 : f32
    %162 = vector.broadcast %cst_45 : f32 to vector<8x128xf32>
    %163 = arith.subf %162, %156 : vector<8x128xf32>
    %164 = arith.mulf %163, %161 : vector<8x128xf32>
    %165 = arith.mulf %156, %134 : vector<8x128xf32>
    %166 = arith.addf %164, %165 : vector<8x128xf32>
    %167 = vector.extract_strided_slice %5 {offsets = [40, 0], sizes = [8, 384], strides = [1, 1]} : vector<64x384xf32> to vector<8x384xf32>
    %c0_46 = arith.constant 0 : index
    %c0_47 = arith.constant 0 : index
    %168 = vector.load %arg4[%c0_46, %c0_47] : memref<128x384xf32, #tpu.memory_space<vmem>>, vector<128x384xf32>
    %cst_48 = arith.constant dense<0.000000e+00> : vector<8x384xf32>
    %169 = tpu.matmul %166, %168, %cst_48 {dimension_numbers = #tpu.dot_dimension_numbers<[1], [0], [0], [1], [0, 0, 1, 1], [], []>} : vector<8x128xf32>, vector<128x384xf32>, vector<8x384xf32> -> vector<8x384xf32>
    %c0_49 = arith.constant 0 : index
    %c0_50 = arith.constant 0 : index
    %170 = vector.load %arg5[%c0_49, %c0_50] : memref<1x384xf32, #tpu.memory_space<vmem>>, vector<1x384xf32>
    %171 = vector.broadcast %170 : vector<1x384xf32> to vector<8x384xf32>
    %172 = arith.addf %169, %171 : vector<8x384xf32>
    %173 = vector.extract_strided_slice %167 {offsets = [0, 0], sizes = [8, 128], strides = [1, 1]} : vector<8x384xf32> to vector<8x128xf32>
    %174 = vector.extract_strided_slice %172 {offsets = [0, 0], sizes = [8, 128], strides = [1, 1]} : vector<8x384xf32> to vector<8x128xf32>
    %175 = arith.addf %173, %174 : vector<8x128xf32>
    %176 = arith.negf %175 : vector<8x128xf32>
    %177 = math.exp %176 : vector<8x128xf32>
    %cst_51 = arith.constant 1.000000e+00 : f32
    %178 = vector.broadcast %cst_51 : f32 to vector<8x128xf32>
    %179 = arith.addf %178, %177 : vector<8x128xf32>
    %180 = arith.divf %178, %179 : vector<8x128xf32>
    %181 = vector.extract_strided_slice %167 {offsets = [0, 128], sizes = [8, 128], strides = [1, 1]} : vector<8x384xf32> to vector<8x128xf32>
    %182 = vector.extract_strided_slice %172 {offsets = [0, 128], sizes = [8, 128], strides = [1, 1]} : vector<8x384xf32> to vector<8x128xf32>
    %183 = arith.addf %181, %182 : vector<8x128xf32>
    %184 = arith.negf %183 : vector<8x128xf32>
    %185 = math.exp %184 : vector<8x128xf32>
    %cst_52 = arith.constant 1.000000e+00 : f32
    %186 = vector.broadcast %cst_52 : f32 to vector<8x128xf32>
    %187 = arith.addf %186, %185 : vector<8x128xf32>
    %188 = arith.divf %186, %187 : vector<8x128xf32>
    %189 = vector.extract_strided_slice %167 {offsets = [0, 256], sizes = [8, 128], strides = [1, 1]} : vector<8x384xf32> to vector<8x128xf32>
    %190 = vector.extract_strided_slice %172 {offsets = [0, 256], sizes = [8, 128], strides = [1, 1]} : vector<8x384xf32> to vector<8x128xf32>
    %191 = arith.mulf %180, %190 : vector<8x128xf32>
    %192 = arith.addf %189, %191 : vector<8x128xf32>
    %193 = math.tanh %192 : vector<8x128xf32>
    %cst_53 = arith.constant 1.000000e+00 : f32
    %194 = vector.broadcast %cst_53 : f32 to vector<8x128xf32>
    %195 = arith.subf %194, %188 : vector<8x128xf32>
    %196 = arith.mulf %195, %193 : vector<8x128xf32>
    %197 = arith.mulf %188, %166 : vector<8x128xf32>
    %198 = arith.addf %196, %197 : vector<8x128xf32>
    %199 = vector.extract_strided_slice %5 {offsets = [48, 0], sizes = [8, 384], strides = [1, 1]} : vector<64x384xf32> to vector<8x384xf32>
    %c0_54 = arith.constant 0 : index
    %c0_55 = arith.constant 0 : index
    %200 = vector.load %arg4[%c0_54, %c0_55] : memref<128x384xf32, #tpu.memory_space<vmem>>, vector<128x384xf32>
    %cst_56 = arith.constant dense<0.000000e+00> : vector<8x384xf32>
    %201 = tpu.matmul %198, %200, %cst_56 {dimension_numbers = #tpu.dot_dimension_numbers<[1], [0], [0], [1], [0, 0, 1, 1], [], []>} : vector<8x128xf32>, vector<128x384xf32>, vector<8x384xf32> -> vector<8x384xf32>
    %c0_57 = arith.constant 0 : index
    %c0_58 = arith.constant 0 : index
    %202 = vector.load %arg5[%c0_57, %c0_58] : memref<1x384xf32, #tpu.memory_space<vmem>>, vector<1x384xf32>
    %203 = vector.broadcast %202 : vector<1x384xf32> to vector<8x384xf32>
    %204 = arith.addf %201, %203 : vector<8x384xf32>
    %205 = vector.extract_strided_slice %199 {offsets = [0, 0], sizes = [8, 128], strides = [1, 1]} : vector<8x384xf32> to vector<8x128xf32>
    %206 = vector.extract_strided_slice %204 {offsets = [0, 0], sizes = [8, 128], strides = [1, 1]} : vector<8x384xf32> to vector<8x128xf32>
    %207 = arith.addf %205, %206 : vector<8x128xf32>
    %208 = arith.negf %207 : vector<8x128xf32>
    %209 = math.exp %208 : vector<8x128xf32>
    %cst_59 = arith.constant 1.000000e+00 : f32
    %210 = vector.broadcast %cst_59 : f32 to vector<8x128xf32>
    %211 = arith.addf %210, %209 : vector<8x128xf32>
    %212 = arith.divf %210, %211 : vector<8x128xf32>
    %213 = vector.extract_strided_slice %199 {offsets = [0, 128], sizes = [8, 128], strides = [1, 1]} : vector<8x384xf32> to vector<8x128xf32>
    %214 = vector.extract_strided_slice %204 {offsets = [0, 128], sizes = [8, 128], strides = [1, 1]} : vector<8x384xf32> to vector<8x128xf32>
    %215 = arith.addf %213, %214 : vector<8x128xf32>
    %216 = arith.negf %215 : vector<8x128xf32>
    %217 = math.exp %216 : vector<8x128xf32>
    %cst_60 = arith.constant 1.000000e+00 : f32
    %218 = vector.broadcast %cst_60 : f32 to vector<8x128xf32>
    %219 = arith.addf %218, %217 : vector<8x128xf32>
    %220 = arith.divf %218, %219 : vector<8x128xf32>
    %221 = vector.extract_strided_slice %199 {offsets = [0, 256], sizes = [8, 128], strides = [1, 1]} : vector<8x384xf32> to vector<8x128xf32>
    %222 = vector.extract_strided_slice %204 {offsets = [0, 256], sizes = [8, 128], strides = [1, 1]} : vector<8x384xf32> to vector<8x128xf32>
    %223 = arith.mulf %212, %222 : vector<8x128xf32>
    %224 = arith.addf %221, %223 : vector<8x128xf32>
    %225 = math.tanh %224 : vector<8x128xf32>
    %cst_61 = arith.constant 1.000000e+00 : f32
    %226 = vector.broadcast %cst_61 : f32 to vector<8x128xf32>
    %227 = arith.subf %226, %220 : vector<8x128xf32>
    %228 = arith.mulf %227, %225 : vector<8x128xf32>
    %229 = arith.mulf %220, %198 : vector<8x128xf32>
    %230 = arith.addf %228, %229 : vector<8x128xf32>
    %231 = vector.extract_strided_slice %5 {offsets = [56, 0], sizes = [8, 384], strides = [1, 1]} : vector<64x384xf32> to vector<8x384xf32>
    %c0_62 = arith.constant 0 : index
    %c0_63 = arith.constant 0 : index
    %232 = vector.load %arg4[%c0_62, %c0_63] : memref<128x384xf32, #tpu.memory_space<vmem>>, vector<128x384xf32>
    %cst_64 = arith.constant dense<0.000000e+00> : vector<8x384xf32>
    %233 = tpu.matmul %230, %232, %cst_64 {dimension_numbers = #tpu.dot_dimension_numbers<[1], [0], [0], [1], [0, 0, 1, 1], [], []>} : vector<8x128xf32>, vector<128x384xf32>, vector<8x384xf32> -> vector<8x384xf32>
    %c0_65 = arith.constant 0 : index
    %c0_66 = arith.constant 0 : index
    %234 = vector.load %arg5[%c0_65, %c0_66] : memref<1x384xf32, #tpu.memory_space<vmem>>, vector<1x384xf32>
    %235 = vector.broadcast %234 : vector<1x384xf32> to vector<8x384xf32>
    %236 = arith.addf %233, %235 : vector<8x384xf32>
    %237 = vector.extract_strided_slice %231 {offsets = [0, 0], sizes = [8, 128], strides = [1, 1]} : vector<8x384xf32> to vector<8x128xf32>
    %238 = vector.extract_strided_slice %236 {offsets = [0, 0], sizes = [8, 128], strides = [1, 1]} : vector<8x384xf32> to vector<8x128xf32>
    %239 = arith.addf %237, %238 : vector<8x128xf32>
    %240 = arith.negf %239 : vector<8x128xf32>
    %241 = math.exp %240 : vector<8x128xf32>
    %cst_67 = arith.constant 1.000000e+00 : f32
    %242 = vector.broadcast %cst_67 : f32 to vector<8x128xf32>
    %243 = arith.addf %242, %241 : vector<8x128xf32>
    %244 = arith.divf %242, %243 : vector<8x128xf32>
    %245 = vector.extract_strided_slice %231 {offsets = [0, 128], sizes = [8, 128], strides = [1, 1]} : vector<8x384xf32> to vector<8x128xf32>
    %246 = vector.extract_strided_slice %236 {offsets = [0, 128], sizes = [8, 128], strides = [1, 1]} : vector<8x384xf32> to vector<8x128xf32>
    %247 = arith.addf %245, %246 : vector<8x128xf32>
    %248 = arith.negf %247 : vector<8x128xf32>
    %249 = math.exp %248 : vector<8x128xf32>
    %cst_68 = arith.constant 1.000000e+00 : f32
    %250 = vector.broadcast %cst_68 : f32 to vector<8x128xf32>
    %251 = arith.addf %250, %249 : vector<8x128xf32>
    %252 = arith.divf %250, %251 : vector<8x128xf32>
    %253 = vector.extract_strided_slice %231 {offsets = [0, 256], sizes = [8, 128], strides = [1, 1]} : vector<8x384xf32> to vector<8x128xf32>
    %254 = vector.extract_strided_slice %236 {offsets = [0, 256], sizes = [8, 128], strides = [1, 1]} : vector<8x384xf32> to vector<8x128xf32>
    %255 = arith.mulf %244, %254 : vector<8x128xf32>
    %256 = arith.addf %253, %255 : vector<8x128xf32>
    %257 = math.tanh %256 : vector<8x128xf32>
    %cst_69 = arith.constant 1.000000e+00 : f32
    %258 = vector.broadcast %cst_69 : f32 to vector<8x128xf32>
    %259 = arith.subf %258, %252 : vector<8x128xf32>
    %260 = arith.mulf %259, %257 : vector<8x128xf32>
    %261 = arith.mulf %252, %230 : vector<8x128xf32>
    %262 = arith.addf %260, %261 : vector<8x128xf32>
    %c0_70 = arith.constant 0 : index
    %c0_71 = arith.constant 0 : index
    %263 = vector.load %arg6[%c0_70, %c0_71] : memref<128x128xf32, #tpu.memory_space<vmem>>, vector<128x128xf32>
    %cst_72 = arith.constant dense<0.000000e+00> : vector<8x128xf32>
    %264 = tpu.matmul %262, %263, %cst_72 {dimension_numbers = #tpu.dot_dimension_numbers<[1], [0], [0], [1], [0, 0, 1, 1], [], []>} : vector<8x128xf32>, vector<128x128xf32>, vector<8x128xf32> -> vector<8x128xf32>
    %c0_73 = arith.constant 0 : index
    %c0_74 = arith.constant 0 : index
    %265 = vector.load %arg7[%c0_73, %c0_74] : memref<1x128xf32, #tpu.memory_space<vmem>>, vector<1x128xf32>
    %266 = vector.broadcast %265 : vector<1x128xf32> to vector<8x128xf32>
    %267 = arith.addf %264, %266 : vector<8x128xf32>
    %cst_75 = arith.constant 0.000000e+00 : f32
    %268 = vector.broadcast %cst_75 : f32 to vector<8x128xf32>
    %269 = arith.maximumf %267, %268 : vector<8x128xf32>
    %c0_76 = arith.constant 0 : index
    %c0_77 = arith.constant 0 : index
    %270 = vector.load %arg1[%c0_76, %c0_77] : memref<8x128xf32, #tpu.memory_space<vmem>>, vector<8x128xf32>
    %c0_78 = arith.constant 0 : index
    %c0_79 = arith.constant 0 : index
    %271 = vector.load %arg8[%c0_78, %c0_79] : memref<128x128xf32, #tpu.memory_space<vmem>>, vector<128x128xf32>
    %cst_80 = arith.constant dense<0.000000e+00> : vector<8x128xf32>
    %272 = tpu.matmul %270, %271, %cst_80 {dimension_numbers = #tpu.dot_dimension_numbers<[1], [0], [0], [1], [0, 0, 1, 1], [], []>} : vector<8x128xf32>, vector<128x128xf32>, vector<8x128xf32> -> vector<8x128xf32>
    %c0_81 = arith.constant 0 : index
    %c0_82 = arith.constant 0 : index
    %273 = vector.load %arg9[%c0_81, %c0_82] : memref<1x128xf32, #tpu.memory_space<vmem>>, vector<1x128xf32>
    %274 = vector.broadcast %273 : vector<1x128xf32> to vector<8x128xf32>
    %275 = arith.addf %272, %274 : vector<8x128xf32>
    %cst_83 = arith.constant 0.000000e+00 : f32
    %276 = vector.broadcast %cst_83 : f32 to vector<8x128xf32>
    %277 = arith.maximumf %275, %276 : vector<8x128xf32>
    %278 = arith.mulf %269, %277 : vector<8x128xf32>
    %c0_84 = arith.constant 0 : index
    %c0_85 = arith.constant 0 : index
    %279 = vector.load %arg10[%c0_84, %c0_85] : memref<128x256xf32, #tpu.memory_space<vmem>>, vector<128x256xf32>
    %cst_86 = arith.constant dense<0.000000e+00> : vector<8x256xf32>
    %280 = tpu.matmul %278, %279, %cst_86 {dimension_numbers = #tpu.dot_dimension_numbers<[1], [0], [0], [1], [0, 0, 1, 1], [], []>} : vector<8x128xf32>, vector<128x256xf32>, vector<8x256xf32> -> vector<8x256xf32>
    %c0_87 = arith.constant 0 : index
    %c0_88 = arith.constant 0 : index
    %281 = vector.load %arg11[%c0_87, %c0_88] : memref<1x256xf32, #tpu.memory_space<vmem>>, vector<1x256xf32>
    %282 = vector.broadcast %281 : vector<1x256xf32> to vector<8x256xf32>
    %283 = arith.addf %280, %282 : vector<8x256xf32>
    %cst_89 = arith.constant 0.000000e+00 : f32
    %284 = vector.broadcast %cst_89 : f32 to vector<8x256xf32>
    %285 = arith.maximumf %283, %284 : vector<8x256xf32>
    %c0_90 = arith.constant 0 : index
    %c0_91 = arith.constant 0 : index
    %286 = vector.load %arg12[%c0_90, %c0_91] : memref<256x128xf32, #tpu.memory_space<vmem>>, vector<256x128xf32>
    %cst_92 = arith.constant dense<0.000000e+00> : vector<8x128xf32>
    %287 = tpu.matmul %285, %286, %cst_92 {dimension_numbers = #tpu.dot_dimension_numbers<[1], [0], [0], [1], [0, 0, 1, 1], [], []>} : vector<8x256xf32>, vector<256x128xf32>, vector<8x128xf32> -> vector<8x128xf32>
    %c0_93 = arith.constant 0 : index
    %c0_94 = arith.constant 0 : index
    %288 = vector.load %arg13[%c0_93, %c0_94] : memref<1x128xf32, #tpu.memory_space<vmem>>, vector<1x128xf32>
    %289 = vector.broadcast %288 : vector<1x128xf32> to vector<8x128xf32>
    %290 = arith.addf %287, %289 : vector<8x128xf32>
    %c0_95 = arith.constant 0 : index
    %c0_96 = arith.constant 0 : index
    %291 = vector.load %arg14[%c0_95, %c0_96] : memref<8x128xf32, #tpu.memory_space<vmem>>, vector<8x128xf32>
    tpu.vector_store %arg14[%c0_95, %c0_96], %290 {strides = array<i32>} : memref<8x128xf32, #tpu.memory_space<vmem>>, vector<8x128xf32>,
    return
  }
}

</mosaic_0001>

<llo_original>
// kernel: base_model_forward.1
$region0: #{base_model_forward.1}
  #allocation0 [shape = 'u32[]', space=smem, size = 0x4, offset = 0x4, fixed_abs, tag = 'smem constant byte address 0x4 - core index']
  #allocation1 [shape = 'u32[72,128]{1,0:T(1,128)}', space=vmem, size = 0x9000, scoped, tag = 'internal scratch']
  %s0 = inlined_call_operand.vmem [shape: f32[64,128], index: 0, kind: input, shape index: {}]
  %s1 = inlined_call_operand.vmem [shape: f32[8,128], index: 1, kind: input, shape index: {}]
  %s2 = inlined_call_operand.vmem [shape: f32[128,384], index: 2, kind: input, shape index: {}]
  %s3 = inlined_call_operand.vmem [shape: f32[1,384], index: 3, kind: input, shape index: {}]
  %s4 = inlined_call_operand.vmem [shape: f32[128,384], index: 4, kind: input, shape index: {}]
  %s5 = inlined_call_operand.vmem [shape: f32[1,384], index: 5, kind: input, shape index: {}]
  %s6 = inlined_call_operand.vmem [shape: f32[128,128], index: 6, kind: input, shape index: {}]
  %s7 = inlined_call_operand.vmem [shape: f32[1,128], index: 7, kind: input, shape index: {}]
  %s8 = inlined_call_operand.vmem [shape: f32[128,128], index: 8, kind: input, shape index: {}]
  %s9 = inlined_call_operand.vmem [shape: f32[1,128], index: 9, kind: input, shape index: {}]
  %s10 = inlined_call_operand.vmem [shape: f32[128,256], index: 10, kind: input, shape index: {}]
  %s11 = inlined_call_operand.vmem [shape: f32[1,256], index: 11, kind: input, shape index: {}]
  %s12 = inlined_call_operand.vmem [shape: f32[256,128], index: 12, kind: input, shape index: {}]
  %s13 = inlined_call_operand.vmem [shape: f32[1,128], index: 13, kind: input, shape index: {}]
  %s14 = inlined_call_operand.hbm [shape: f32[8,128], index: 14, kind: output, shape index: {}]
  %s15 = sld [smem:[#allocation0]]
  $region66: #{base_model_forward.1} parent=0
    _
  %s17 = ssub.s32 1, %s15
  %s18 = scalar_select 0, %s17, %s15
  $region1: #{base_model_forward.1} parent=0
    #allocation2 [shape = 'u8[4096]{0}', space=vmem, size = 0x1000, scoped, tag = 'output window, operand 0, single buffered']
    #allocation3 [shape = 's32[1]{0}', space=sflag, size = 0x4, scoped, tag = 'scoped memory for base_model_forward.1']
    %19 = vsyncpa [#allocation3], 0
    // Predicated region
    $region2: #{base_model_forward.1} parent=1 // pred_check
      _
    $region3: #{base_model_forward.1} parent=1 // pred_check_branch
      %21 = sbr.rel (0) target = $region5
    $region4: #{base_model_forward.1} parent=1 // pred_region
      _
    $region5: #{base_model_forward.1} parent=1 // pred_fallthru
      _
    // Predicated region
    $region6: #{base_model_forward.1} parent=1 // pred_check
      _
    $region7: #{base_model_forward.1} parent=1 // pred_check_branch
      %23 = sbr.rel (0) target = $region9
    $region8: #{base_model_forward.1} parent=1 // pred_region
      _
    $region9: #{base_model_forward.1} parent=1 // pred_fallthru
      _
    // Predicated region
    $region10: #{base_model_forward.1} parent=1 // pred_check
      _
    $region11: #{base_model_forward.1} parent=1 // pred_check_branch
      %25 = sbr.rel (0) target = $region13
    $region12: #{base_model_forward.1} parent=1 // pred_region
      _
    $region13: #{base_model_forward.1} parent=1 // pred_fallthru
      _
    // Predicated region
    $region14: #{base_model_forward.1} parent=1 // pred_check
      _
    $region15: #{base_model_forward.1} parent=1 // pred_check_branch
      %27 = sbr.rel (0) target = $region17
    $region16: #{base_model_forward.1} parent=1 // pred_region
      _
    $region17: #{base_model_forward.1} parent=1 // pred_fallthru
      _
    // Predicated region
    $region18: #{base_model_forward.1} parent=1 // pred_check
      _
    $region19: #{base_model_forward.1} parent=1 // pred_check_branch
      %29 = sbr.rel (0) target = $region21
    $region20: #{base_model_forward.1} parent=1 // pred_region
      _
    $region21: #{base_model_forward.1} parent=1 // pred_fallthru
      _
    // Predicated region
    $region22: #{base_model_forward.1} parent=1 // pred_check
      _
    $region23: #{base_model_forward.1} parent=1 // pred_check_branch
      %31 = sbr.rel (0) target = $region25
    $region24: #{base_model_forward.1} parent=1 // pred_region
      _
    $region25: #{base_model_forward.1} parent=1 // pred_fallthru
      _
    // Predicated region
    $region26: #{base_model_forward.1} parent=1 // pred_check
      _
    $region27: #{base_model_forward.1} parent=1 // pred_check_branch
      %33 = sbr.rel (0) target = $region29
    $region28: #{base_model_forward.1} parent=1 // pred_region
      _
    $region29: #{base_model_forward.1} parent=1 // pred_fallthru
      _
    // Predicated region
    $region30: #{base_model_forward.1} parent=1 // pred_check
      _
    $region31: #{base_model_forward.1} parent=1 // pred_check_branch
      %35 = sbr.rel (0) target = $region33
    $region32: #{base_model_forward.1} parent=1 // pred_region
      _
    $region33: #{base_model_forward.1} parent=1 // pred_fallthru
      _
    // Predicated region
    $region34: #{base_model_forward.1} parent=1 // pred_check
      _
    $region35: #{base_model_forward.1} parent=1 // pred_check_branch
      %37 = sbr.rel (0) target = $region37
    $region36: #{base_model_forward.1} parent=1 // pred_region
      _
    $region37: #{base_model_forward.1} parent=1 // pred_fallthru
      _
    // Predicated region
    $region38: #{base_model_forward.1} parent=1 // pred_check
      _
    $region39: #{base_model_forward.1} parent=1 // pred_check_branch
      %39 = sbr.rel (0) target = $region41
    $region40: #{base_model_forward.1} parent=1 // pred_region
      _
    $region41: #{base_model_forward.1} parent=1 // pred_fallthru
      _
    // Predicated region
    $region42: #{base_model_forward.1} parent=1 // pred_check
      _
    $region43: #{base_model_forward.1} parent=1 // pred_check_branch
      %41 = sbr.rel (0) target = $region45
    $region44: #{base_model_forward.1} parent=1 // pred_region
      _
    $region45: #{base_model_forward.1} parent=1 // pred_fallthru
      _
    // Predicated region
    $region46: #{base_model_forward.1} parent=1 // pred_check
      _
    $region47: #{base_model_forward.1} parent=1 // pred_check_branch
      %43 = sbr.rel (0) target = $region49
    $region48: #{base_model_forward.1} parent=1 // pred_region
      _
    $region49: #{base_model_forward.1} parent=1 // pred_fallthru
      _
    // Predicated region
    $region50: #{base_model_forward.1} parent=1 // pred_check
      _
    $region51: #{base_model_forward.1} parent=1 // pred_check_branch
      %45 = sbr.rel (0) target = $region53
    $region52: #{base_model_forward.1} parent=1 // pred_region
      _
    $region53: #{base_model_forward.1} parent=1 // pred_fallthru
      _
    // Predicated region
    $region54: #{base_model_forward.1} parent=1 // pred_check
      _
    $region55: #{base_model_forward.1} parent=1 // pred_check_branch
      %47 = sbr.rel (0) target = $region57
    $region56: #{base_model_forward.1} parent=1 // pred_region
      _
    $region57: #{base_model_forward.1} parent=1 // pred_fallthru
      _
    %v48 = vld [vmem:[%s0] sm:$0xff]
    %v49 = vld [vmem:[%s0 + $0x8] sm:$0xff]
    %v50 = vld [vmem:[%s0 + $0x10] sm:$0xff]
    %v51 = vld [vmem:[%s0 + $0x18] sm:$0xff]
    %v52 = vld [vmem:[%s0 + $0x20] sm:$0xff]
    %v53 = vld [vmem:[%s0 + $0x28] sm:$0xff]
    %v54 = vld [vmem:[%s0 + $0x30] sm:$0xff]
    %v55 = vld [vmem:[%s0 + $0x38] sm:$0xff]
    %v56 = vld [vmem:[%s2] sm:$0xff]
    %v57 = vld [vmem:[%s2 + $0x8] sm:$0xff]
    %v58 = vld [vmem:[%s2 + $0x10] sm:$0xff]
    %v59 = vld [vmem:[%s2 + $0x18] sm:$0xff]
    %v60 = vld [vmem:[%s2 + $0x20] sm:$0xff]
    %v61 = vld [vmem:[%s2 + $0x28] sm:$0xff]
    %v62 = vld [vmem:[%s2 + $0x30] sm:$0xff]
    %v63 = vld [vmem:[%s2 + $0x38] sm:$0xff]
    %v64 = vld [vmem:[%s2 + $0x40] sm:$0xff]
    %v65 = vld [vmem:[%s2 + $0x48] sm:$0xff]
    %v66 = vld [vmem:[%s2 + $0x50] sm:$0xff]
    %v67 = vld [vmem:[%s2 + $0x58] sm:$0xff]
    %v68 = vld [vmem:[%s2 + $0x60] sm:$0xff]
    %v69 = vld [vmem:[%s2 + $0x68] sm:$0xff]
    %v70 = vld [vmem:[%s2 + $0x70] sm:$0xff]
    %v71 = vld [vmem:[%s2 + $0x78] sm:$0xff]
    %v72 = vld [vmem:[%s2 + $0x80] sm:$0xff]
    %v73 = vld [vmem:[%s2 + $0x88] sm:$0xff]
    %v74 = vld [vmem:[%s2 + $0x90] sm:$0xff]
    %v75 = vld [vmem:[%s2 + $0x98] sm:$0xff]
    %v76 = vld [vmem:[%s2 + $0xa0] sm:$0xff]
    %v77 = vld [vmem:[%s2 + $0xa8] sm:$0xff]
    %v78 = vld [vmem:[%s2 + $0xb0] sm:$0xff]
    %v79 = vld [vmem:[%s2 + $0xb8] sm:$0xff]
    %v80 = vld [vmem:[%s2 + $0xc0] sm:$0xff]
    %v81 = vld [vmem:[%s2 + $0xc8] sm:$0xff]
    %v82 = vld [vmem:[%s2 + $0xd0] sm:$0xff]
    %v83 = vld [vmem:[%s2 + $0xd8] sm:$0xff]
    %v84 = vld [vmem:[%s2 + $0xe0] sm:$0xff]
    %v85 = vld [vmem:[%s2 + $0xe8] sm:$0xff]
    %v86 = vld [vmem:[%s2 + $0xf0] sm:$0xff]
    %v87 = vld [vmem:[%s2 + $0xf8] sm:$0xff]
    %v88 = vld [vmem:[%s2 + $0x100] sm:$0xff]
    %v89 = vld [vmem:[%s2 + $0x108] sm:$0xff]
    %v90 = vld [vmem:[%s2 + $0x110] sm:$0xff]
    %v91 = vld [vmem:[%s2 + $0x118] sm:$0xff]
    %v92 = vld [vmem:[%s2 + $0x120] sm:$0xff]
    %v93 = vld [vmem:[%s2 + $0x128] sm:$0xff]
    %v94 = vld [vmem:[%s2 + $0x130] sm:$0xff]
    %v95 = vld [vmem:[%s2 + $0x138] sm:$0xff]
    %v96 = vld [vmem:[%s2 + $0x140] sm:$0xff]
    %v97 = vld [vmem:[%s2 + $0x148] sm:$0xff]
    %v98 = vld [vmem:[%s2 + $0x150] sm:$0xff]
    %v99 = vld [vmem:[%s2 + $0x158] sm:$0xff]
    %v100 = vld [vmem:[%s2 + $0x160] sm:$0xff]
    %v101 = vld [vmem:[%s2 + $0x168] sm:$0xff]
    %v102 = vld [vmem:[%s2 + $0x170] sm:$0xff]
    %v103 = vld [vmem:[%s2 + $0x178] sm:$0xff]
    %v104 = vld [vmem:[%s3] sm:$0x7]
    %v106 = vperm.slane %v104, 0
    %v107 = vperm.slane %v104, 1
    %v108 = vperm.slane %v104, 2
    %112 = vmatpush.msra.mxu0 %v101
    %113 = vmatpush.msra.mxu0 %v98
    %114 = vmatpush.msra.mxu0 %v95
    %115 = vmatpush.msra.mxu0 %v92
    %116 = vmatpush.msra.mxu0 %v89
    %117 = vmatpush.msra.mxu0 %v86
    %118 = vmatpush.msra.mxu0 %v83
    %119 = vmatpush.msra.mxu0 %v80
    %120 = vmatpush.msra.mxu0 %v77
    %121 = vmatpush.msra.mxu0 %v74
    %122 = vmatpush.msra.mxu0 %v71
    %123 = vmatpush.msra.mxu0 %v68
    %124 = vmatpush.msra.mxu0 %v65
    %125 = vmatpush.msra.mxu0 %v62
    %126 = vmatpush.msra.mxu0 %v59
    %127 = vmatpush.msra.mxu0 %v56
    %128 = vmatmul.f32.gmra.mxu0 %v48
    %v129 = vpop.f32.mrf.mxu0
    %v130 = vadd.f32 %v106, %v129
    %131 = vmatmul.f32.gmra.mxu0 %v49
    %v132 = vpop.f32.mrf.mxu0
    %v133 = vadd.f32 %v106, %v132
    %134 = vmatmul.f32.gmra.mxu0 %v50
    %v135 = vpop.f32.mrf.mxu0
    %v136 = vadd.f32 %v106, %v135
    %137 = vmatmul.f32.gmra.mxu0 %v51
    %v138 = vpop.f32.mrf.mxu0
    %v139 = vadd.f32 %v106, %v138
    %140 = vmatmul.f32.gmra.mxu0 %v52
    %v141 = vpop.f32.mrf.mxu0
    %v142 = vadd.f32 %v106, %v141
    %143 = vmatmul.f32.gmra.mxu0 %v53
    %v144 = vpop.f32.mrf.mxu0
    %v145 = vadd.f32 %v106, %v144
    %146 = vmatmul.f32.gmra.mxu0 %v54
    %v147 = vpop.f32.mrf.mxu0
    %v148 = vadd.f32 %v106, %v147
    %149 = vmatmul.f32.gmra.mxu0 %v55
    %v150 = vpop.f32.mrf.mxu0
    %v151 = vadd.f32 %v106, %v150
    %152 = vdwg.mxu0
    %153 = vmatpush.msra.mxu0 %v102
    %154 = vmatpush.msra.mxu0 %v99
    %155 = vmatpush.msra.mxu0 %v96
    %156 = vmatpush.msra.mxu0 %v93
    %157 = vmatpush.msra.mxu0 %v90
    %158 = vmatpush.msra.mxu0 %v87
    %159 = vmatpush.msra.mxu0 %v84
    %160 = vmatpush.msra.mxu0 %v81
    %161 = vmatpush.msra.mxu0 %v78
    %162 = vmatpush.msra.mxu0 %v75
    %163 = vmatpush.msra.mxu0 %v72
    %164 = vmatpush.msra.mxu0 %v69
    %165 = vmatpush.msra.mxu0 %v66
    %166 = vmatpush.msra.mxu0 %v63
    %167 = vmatpush.msra.mxu0 %v60
    %168 = vmatpush.msra.mxu0 %v57
    %169 = vmatmul.f32.gmra.mxu0 %v48
    %v170 = vpop.f32.mrf.mxu0
    %v171 = vadd.f32 %v107, %v170
    %172 = vmatmul.f32.gmra.mxu0 %v49
    %v173 = vpop.f32.mrf.mxu0
    %v174 = vadd.f32 %v107, %v173
    %175 = vmatmul.f32.gmra.mxu0 %v50
    %v176 = vpop.f32.mrf.mxu0
    %v177 = vadd.f32 %v107, %v176
    %178 = vmatmul.f32.gmra.mxu0 %v51
    %v179 = vpop.f32.mrf.mxu0
    %v180 = vadd.f32 %v107, %v179
    %181 = vmatmul.f32.gmra.mxu0 %v52
    %v182 = vpop.f32.mrf.mxu0
    %v183 = vadd.f32 %v107, %v182
    %184 = vmatmul.f32.gmra.mxu0 %v53
    %v185 = vpop.f32.mrf.mxu0
    %v186 = vadd.f32 %v107, %v185
    %187 = vmatmul.f32.gmra.mxu0 %v54
    %v188 = vpop.f32.mrf.mxu0
    %v189 = vadd.f32 %v107, %v188
    %190 = vmatmul.f32.gmra.mxu0 %v55
    %v191 = vpop.f32.mrf.mxu0
    %v192 = vadd.f32 %v107, %v191
    %193 = vdwg.mxu0
    %194 = vmatpush.msra.mxu0 %v103
    %195 = vmatpush.msra.mxu0 %v100
    %196 = vmatpush.msra.mxu0 %v97
    %197 = vmatpush.msra.mxu0 %v94
    %198 = vmatpush.msra.mxu0 %v91
    %199 = vmatpush.msra.mxu0 %v88
    %200 = vmatpush.msra.mxu0 %v85
    %201 = vmatpush.msra.mxu0 %v82
    %202 = vmatpush.msra.mxu0 %v79
    %203 = vmatpush.msra.mxu0 %v76
    %204 = vmatpush.msra.mxu0 %v73
    %205 = vmatpush.msra.mxu0 %v70
    %206 = vmatpush.msra.mxu0 %v67
    %207 = vmatpush.msra.mxu0 %v64
    %208 = vmatpush.msra.mxu0 %v61
    %209 = vmatpush.msra.mxu0 %v58
    %210 = vmatmul.f32.gmra.mxu0 %v48
    %v211 = vpop.f32.mrf.mxu0
    %v212 = vadd.f32 %v108, %v211
    %213 = vmatmul.f32.gmra.mxu0 %v49
    %v214 = vpop.f32.mrf.mxu0
    %v215 = vadd.f32 %v108, %v214
    %216 = vmatmul.f32.gmra.mxu0 %v50
    %v217 = vpop.f32.mrf.mxu0
    %v218 = vadd.f32 %v108, %v217
    %219 = vmatmul.f32.gmra.mxu0 %v51
    %v220 = vpop.f32.mrf.mxu0
    %v221 = vadd.f32 %v108, %v220
    %222 = vmatmul.f32.gmra.mxu0 %v52
    %v223 = vpop.f32.mrf.mxu0
    %v224 = vadd.f32 %v108, %v223
    %225 = vmatmul.f32.gmra.mxu0 %v53
    %v226 = vpop.f32.mrf.mxu0
    %v227 = vadd.f32 %v108, %v226
    %228 = vmatmul.f32.gmra.mxu0 %v54
    %v229 = vpop.f32.mrf.mxu0
    %v230 = vadd.f32 %v108, %v229
    %231 = vmatmul.f32.gmra.mxu0 %v55
    %v232 = vpop.f32.mrf.mxu0
    %v233 = vadd.f32 %v108, %v232
    %234 = vdwg.mxu0
    %v235 = vld [vmem:[%s4] sm:$0xff]
    %v236 = vld [vmem:[%s4 + $0x8] sm:$0xff]
    %v237 = vld [vmem:[%s4 + $0x10] sm:$0xff]
    %v238 = vld [vmem:[%s4 + $0x18] sm:$0xff]
    %v239 = vld [vmem:[%s4 + $0x20] sm:$0xff]
    %v240 = vld [vmem:[%s4 + $0x28] sm:$0xff]
    %v241 = vld [vmem:[%s4 + $0x30] sm:$0xff]
    %v242 = vld [vmem:[%s4 + $0x38] sm:$0xff]
    %v243 = vld [vmem:[%s4 + $0x40] sm:$0xff]
    %v244 = vld [vmem:[%s4 + $0x48] sm:$0xff]
    %v245 = vld [vmem:[%s4 + $0x50] sm:$0xff]
    %v246 = vld [vmem:[%s4 + $0x58] sm:$0xff]
    %v247 = vld [vmem:[%s4 + $0x60] sm:$0xff]
    %v248 = vld [vmem:[%s4 + $0x68] sm:$0xff]
    %v249 = vld [vmem:[%s4 + $0x70] sm:$0xff]
    %v250 = vld [vmem:[%s4 + $0x78] sm:$0xff]
    %v251 = vld [vmem:[%s4 + $0x80] sm:$0xff]
    %v252 = vld [vmem:[%s4 + $0x88] sm:$0xff]
    %v253 = vld [vmem:[%s4 + $0x90] sm:$0xff]
    %v254 = vld [vmem:[%s4 + $0x98] sm:$0xff]
    %v255 = vld [vmem:[%s4 + $0xa0] sm:$0xff]
    %v256 = vld [vmem:[%s4 + $0xa8] sm:$0xff]
    %v257 = vld [vmem:[%s4 + $0xb0] sm:$0xff]
    %v258 = vld [vmem:[%s4 + $0xb8] sm:$0xff]
    %v259 = vld [vmem:[%s4 + $0xc0] sm:$0xff]
    %v260 = vld [vmem:[%s4 + $0xc8] sm:$0xff]
    %v261 = vld [vmem:[%s4 + $0xd0] sm:$0xff]
    %v262 = vld [vmem:[%s4 + $0xd8] sm:$0xff]
    %v263 = vld [vmem:[%s4 + $0xe0] sm:$0xff]
    %v264 = vld [vmem:[%s4 + $0xe8] sm:$0xff]
    %v265 = vld [vmem:[%s4 + $0xf0] sm:$0xff]
    %v266 = vld [vmem:[%s4 + $0xf8] sm:$0xff]
    %v267 = vld [vmem:[%s4 + $0x100] sm:$0xff]
    %v268 = vld [vmem:[%s4 + $0x108] sm:$0xff]
    %v269 = vld [vmem:[%s4 + $0x110] sm:$0xff]
    %v270 = vld [vmem:[%s4 + $0x118] sm:$0xff]
    %v271 = vld [vmem:[%s4 + $0x120] sm:$0xff]
    %v272 = vld [vmem:[%s4 + $0x128] sm:$0xff]
    %v273 = vld [vmem:[%s4 + $0x130] sm:$0xff]
    %v274 = vld [vmem:[%s4 + $0x138] sm:$0xff]
    %v275 = vld [vmem:[%s4 + $0x140] sm:$0xff]
    %v276 = vld [vmem:[%s4 + $0x148] sm:$0xff]
    %v277 = vld [vmem:[%s4 + $0x150] sm:$0xff]
    %v278 = vld [vmem:[%s4 + $0x158] sm:$0xff]
    %v279 = vld [vmem:[%s4 + $0x160] sm:$0xff]
    %v280 = vld [vmem:[%s4 + $0x168] sm:$0xff]
    %v281 = vld [vmem:[%s4 + $0x170] sm:$0xff]
    %v282 = vld [vmem:[%s4 + $0x178] sm:$0xff]
    %v283 = vld [vmem:[%s5] sm:$0x7]
    %v285 = vperm.slane %v283, 0
    %v286 = vperm.slane %v283, 1
    %v287 = vperm.slane %v283, 2
    %291 = vmatpush.msra.mxu0 %v280
    %292 = vmatpush.msra.mxu0 %v277
    %293 = vmatpush.msra.mxu0 %v274
    %294 = vmatpush.msra.mxu0 %v271
    %295 = vmatpush.msra.mxu0 %v268
    %296 = vmatpush.msra.mxu0 %v265
    %297 = vmatpush.msra.mxu0 %v262
    %298 = vmatpush.msra.mxu0 %v259
    %299 = vmatpush.msra.mxu0 %v256
    %300 = vmatpush.msra.mxu0 %v253
    %301 = vmatpush.msra.mxu0 %v250
    %302 = vmatpush.msra.mxu0 %v247
    %303 = vmatpush.msra.mxu0 %v244
    %304 = vmatpush.msra.mxu0 %v241
    %305 = vmatpush.msra.mxu0 %v238
    %306 = vmatpush.msra.mxu0 %v235
    %307 = vmatmul.f32.gmra.mxu0 0.0
    %v308 = vpop.f32.mrf.mxu0
    %v309 = vadd.f32 %v285, %v308
    %310 = vdwg.mxu0
    %311 = vmatpush.msra.mxu0 %v281
    %312 = vmatpush.msra.mxu0 %v278
    %313 = vmatpush.msra.mxu0 %v275
    %314 = vmatpush.msra.mxu0 %v272
    %315 = vmatpush.msra.mxu0 %v269
    %316 = vmatpush.msra.mxu0 %v266
    %317 = vmatpush.msra.mxu0 %v263
    %318 = vmatpush.msra.mxu0 %v260
    %319 = vmatpush.msra.mxu0 %v257
    %320 = vmatpush.msra.mxu0 %v254
    %321 = vmatpush.msra.mxu0 %v251
    %322 = vmatpush.msra.mxu0 %v248
    %323 = vmatpush.msra.mxu0 %v245
    %324 = vmatpush.msra.mxu0 %v242
    %325 = vmatpush.msra.mxu0 %v239
    %326 = vmatpush.msra.mxu0 %v236
    %327 = vmatmul.f32.gmra.mxu0 0.0
    %v328 = vpop.f32.mrf.mxu0
    %v329 = vadd.f32 %v286, %v328
    %330 = vdwg.mxu0
    %331 = vmatpush.msra.mxu0 %v282
    %332 = vmatpush.msra.mxu0 %v279
    %333 = vmatpush.msra.mxu0 %v276
    %334 = vmatpush.msra.mxu0 %v273
    %335 = vmatpush.msra.mxu0 %v270
    %336 = vmatpush.msra.mxu0 %v267
    %337 = vmatpush.msra.mxu0 %v264
    %338 = vmatpush.msra.mxu0 %v261
    %339 = vmatpush.msra.mxu0 %v258
    %340 = vmatpush.msra.mxu0 %v255
    %341 = vmatpush.msra.mxu0 %v252
    %342 = vmatpush.msra.mxu0 %v249
    %343 = vmatpush.msra.mxu0 %v246
    %344 = vmatpush.msra.mxu0 %v243
    %345 = vmatpush.msra.mxu0 %v240
    %346 = vmatpush.msra.mxu0 %v237
    %347 = vmatmul.f32.gmra.mxu0 0.0
    %v348 = vpop.f32.mrf.mxu0
    %v349 = vadd.f32 %v287, %v348
    %350 = vdwg.mxu0
    %v351 = vadd.f32 %v130, %v309
    %v352 = vxor.u32 %v351, 2147483648
    %v353 = vmul.f32 %v352, 1.442695
    %v354 = vpow.pop %v353
    %v355 = vadd.f32 %v354, 1.0
    %v356 = vrcp.pop %v355
    %v357 = vmul.f32 %v355, %v356
    %v358 = vsub.f32 1.0, %v357
    %v359 = vmul.f32 %v356, %v358
    %v360 = vadd.f32 %v356, %v359
    %vm361 = vweird.f32 %v355
    %vm362 = vweird.f32 %v356
    %vm363 = vmor %vm361, %vm362
    %v364 = vsel %vm363, %v356, %v360
    %v365 = vand.u32 2147483647, %v355
    %vm366 = vcmp.eq.f32.partialorder %v365, 8.507059e+37
    %v367 = vand.u32 %v355, 2147483648
    %v368 = vor.u32 1.1754944e-38, %v367
    %v369 = vsel %vm366, %v368, %v364
    %v370 = vmul.f32 1.0, %v369
    %v371 = vadd.f32 %v171, %v329
    %v372 = vxor.u32 %v371, 2147483648
    %v373 = vmul.f32 %v372, 1.442695
    %v374 = vpow.pop %v373
    %v375 = vadd.f32 %v374, 1.0
    %v376 = vrcp.pop %v375
    %v377 = vmul.f32 %v375, %v376
    %v378 = vsub.f32 1.0, %v377
    %v379 = vmul.f32 %v376, %v378
    %v380 = vadd.f32 %v376, %v379
    %vm381 = vweird.f32 %v375
    %vm382 = vweird.f32 %v376
    %vm383 = vmor %vm381, %vm382
    %v384 = vsel %vm383, %v376, %v380
    %v385 = vand.u32 2147483647, %v375
    %vm386 = vcmp.eq.f32.partialorder %v385, 8.507059e+37
    %v387 = vand.u32 %v375, 2147483648
    %v388 = vor.u32 1.1754944e-38, %v387
    %v389 = vsel %vm386, %v388, %v384
    %v390 = vmul.f32 1.0, %v389
    %v391 = vmul.f32 %v370, %v349
    %v392 = vadd.f32 %v212, %v391
    %v393 = vtanh.pop %v392
    %v394 = vsub.f32 1.0, %v390
    %v395 = vmul.f32 %v394, %v393
    %v396 = vmul.f32 %v390, 0.0
    %v397 = vadd.f32 %v395, %v396
    %398 = vmatpush.msra.mxu0 %v280
    %399 = vmatpush.msra.mxu0 %v277
    %400 = vmatpush.msra.mxu0 %v274
    %401 = vmatpush.msra.mxu0 %v271
    %402 = vmatpush.msra.mxu0 %v268
    %403 = vmatpush.msra.mxu0 %v265
    %404 = vmatpush.msra.mxu0 %v262
    %405 = vmatpush.msra.mxu0 %v259
    %406 = vmatpush.msra.mxu0 %v256
    %407 = vmatpush.msra.mxu0 %v253
    %408 = vmatpush.msra.mxu0 %v250
    %409 = vmatpush.msra.mxu0 %v247
    %410 = vmatpush.msra.mxu0 %v244
    %411 = vmatpush.msra.mxu0 %v241
    %412 = vmatpush.msra.mxu0 %v238
    %413 = vmatpush.msra.mxu0 %v235
    %414 = vmatmul.f32.gmra.mxu0 %v397
    %v415 = vpop.f32.mrf.mxu0
    %v416 = vadd.f32 %v285, %v415
    %417 = vdwg.mxu0
    %418 = vmatpush.msra.mxu0 %v281
    %419 = vmatpush.msra.mxu0 %v278
    %420 = vmatpush.msra.mxu0 %v275
    %421 = vmatpush.msra.mxu0 %v272
    %422 = vmatpush.msra.mxu0 %v269
    %423 = vmatpush.msra.mxu0 %v266
    %424 = vmatpush.msra.mxu0 %v263
    %425 = vmatpush.msra.mxu0 %v260
    %426 = vmatpush.msra.mxu0 %v257
    %427 = vmatpush.msra.mxu0 %v254
    %428 = vmatpush.msra.mxu0 %v251
    %429 = vmatpush.msra.mxu0 %v248
    %430 = vmatpush.msra.mxu0 %v245
    %431 = vmatpush.msra.mxu0 %v242
    %432 = vmatpush.msra.mxu0 %v239
    %433 = vmatpush.msra.mxu0 %v236
    %434 = vmatmul.f32.gmra.mxu0 %v397
    %v435 = vpop.f32.mrf.mxu0
    %v436 = vadd.f32 %v286, %v435
    %437 = vdwg.mxu0
    %438 = vmatpush.msra.mxu0 %v282
    %439 = vmatpush.msra.mxu0 %v279
    %440 = vmatpush.msra.mxu0 %v276
    %441 = vmatpush.msra.mxu0 %v273
    %442 = vmatpush.msra.mxu0 %v270
    %443 = vmatpush.msra.mxu0 %v267
    %444 = vmatpush.msra.mxu0 %v264
    %445 = vmatpush.msra.mxu0 %v261
    %446 = vmatpush.msra.mxu0 %v258
    %447 = vmatpush.msra.mxu0 %v255
    %448 = vmatpush.msra.mxu0 %v252
    %449 = vmatpush.msra.mxu0 %v249
    %450 = vmatpush.msra.mxu0 %v246
    %451 = vmatpush.msra.mxu0 %v243
    %452 = vmatpush.msra.mxu0 %v240
    %453 = vmatpush.msra.mxu0 %v237
    %454 = vmatmul.f32.gmra.mxu0 %v397
    %v455 = vpop.f32.mrf.mxu0
    %v456 = vadd.f32 %v287, %v455
    %457 = vdwg.mxu0
    %v458 = vadd.f32 %v133, %v416
    %v459 = vxor.u32 %v458, 2147483648
    %v460 = vmul.f32 %v459, 1.442695
    %v461 = vpow.pop %v460
    %v462 = vadd.f32 %v461, 1.0
    %v463 = vrcp.pop %v462
    %v464 = vmul.f32 %v462, %v463
    %v465 = vsub.f32 1.0, %v464
    %v466 = vmul.f32 %v463, %v465
    %v467 = vadd.f32 %v463, %v466
    %vm468 = vweird.f32 %v462
    %vm469 = vweird.f32 %v463
    %vm470 = vmor %vm468, %vm469
    %v471 = vsel %vm470, %v463, %v467
    %v472 = vand.u32 2147483647, %v462
    %vm473 = vcmp.eq.f32.partialorder %v472, 8.507059e+37
    %v474 = vand.u32 %v462, 2147483648
    %v475 = vor.u32 1.1754944e-38, %v474
    %v476 = vsel %vm473, %v475, %v471
    %v477 = vmul.f32 1.0, %v476
    %v478 = vadd.f32 %v174, %v436
    %v479 = vxor.u32 %v478, 2147483648
    %v480 = vmul.f32 %v479, 1.442695
    %v481 = vpow.pop %v480
    %v482 = vadd.f32 %v481, 1.0
    %v483 = vrcp.pop %v482
    %v484 = vmul.f32 %v482, %v483
    %v485 = vsub.f32 1.0, %v484
    %v486 = vmul.f32 %v483, %v485
    %v487 = vadd.f32 %v483, %v486
    %vm488 = vweird.f32 %v482
    %vm489 = vweird.f32 %v483
    %vm490 = vmor %vm488, %vm489
    %v491 = vsel %vm490, %v483, %v487
    %v492 = vand.u32 2147483647, %v482
    %vm493 = vcmp.eq.f32.partialorder %v492, 8.507059e+37
    %v494 = vand.u32 %v482, 2147483648
    %v495 = vor.u32 1.1754944e-38, %v494
    %v496 = vsel %vm493, %v495, %v491
    %v497 = vmul.f32 1.0, %v496
    %v498 = vmul.f32 %v477, %v456
    %v499 = vadd.f32 %v215, %v498
    %v500 = vtanh.pop %v499
    %v501 = vsub.f32 1.0, %v497
    %v502 = vmul.f32 %v501, %v500
    %v503 = vmul.f32 %v497, %v397
    %v504 = vadd.f32 %v502, %v503
    %505 = vmatpush.msra.mxu0 %v280
    %506 = vmatpush.msra.mxu0 %v277
    %507 = vmatpush.msra.mxu0 %v274
    %508 = vmatpush.msra.mxu0 %v271
    %509 = vmatpush.msra.mxu0 %v268
    %510 = vmatpush.msra.mxu0 %v265
    %511 = vmatpush.msra.mxu0 %v262
    %512 = vmatpush.msra.mxu0 %v259
    %513 = vmatpush.msra.mxu0 %v256
    %514 = vmatpush.msra.mxu0 %v253
    %515 = vmatpush.msra.mxu0 %v250
    %516 = vmatpush.msra.mxu0 %v247
    %517 = vmatpush.msra.mxu0 %v244
    %518 = vmatpush.msra.mxu0 %v241
    %519 = vmatpush.msra.mxu0 %v238
    %520 = vmatpush.msra.mxu0 %v235
    %521 = vmatmul.f32.gmra.mxu0 %v504
    %v522 = vpop.f32.mrf.mxu0
    %v523 = vadd.f32 %v285, %v522
    %524 = vdwg.mxu0
    %525 = vmatpush.msra.mxu0 %v281
    %526 = vmatpush.msra.mxu0 %v278
    %527 = vmatpush.msra.mxu0 %v275
    %528 = vmatpush.msra.mxu0 %v272
    %529 = vmatpush.msra.mxu0 %v269
    %530 = vmatpush.msra.mxu0 %v266
    %531 = vmatpush.msra.mxu0 %v263
    %532 = vmatpush.msra.mxu0 %v260
    %533 = vmatpush.msra.mxu0 %v257
    %534 = vmatpush.msra.mxu0 %v254
    %535 = vmatpush.msra.mxu0 %v251
    %536 = vmatpush.msra.mxu0 %v248
    %537 = vmatpush.msra.mxu0 %v245
    %538 = vmatpush.msra.mxu0 %v242
    %539 = vmatpush.msra.mxu0 %v239
    %540 = vmatpush.msra.mxu0 %v236
    %541 = vmatmul.f32.gmra.mxu0 %v504
    %v542 = vpop.f32.mrf.mxu0
    %v543 = vadd.f32 %v286, %v542
    %544 = vdwg.mxu0
    %545 = vmatpush.msra.mxu0 %v282
    %546 = vmatpush.msra.mxu0 %v279
    %547 = vmatpush.msra.mxu0 %v276
    %548 = vmatpush.msra.mxu0 %v273
    %549 = vmatpush.msra.mxu0 %v270
    %550 = vmatpush.msra.mxu0 %v267
    %551 = vmatpush.msra.mxu0 %v264
    %552 = vmatpush.msra.mxu0 %v261
    %553 = vmatpush.msra.mxu0 %v258
    %554 = vmatpush.msra.mxu0 %v255
    %555 = vmatpush.msra.mxu0 %v252
    %556 = vmatpush.msra.mxu0 %v249
    %557 = vmatpush.msra.mxu0 %v246
    %558 = vmatpush.msra.mxu0 %v243
    %559 = vmatpush.msra.mxu0 %v240
    %560 = vmatpush.msra.mxu0 %v237
    %561 = vmatmul.f32.gmra.mxu0 %v504
    %v562 = vpop.f32.mrf.mxu0
    %v563 = vadd.f32 %v287, %v562
    %564 = vdwg.mxu0
    %v565 = vadd.f32 %v136, %v523
    %v566 = vxor.u32 %v565, 2147483648
    %v567 = vmul.f32 %v566, 1.442695
    %v568 = vpow.pop %v567
    %v569 = vadd.f32 %v568, 1.0
    %v570 = vrcp.pop %v569
    %v571 = vmul.f32 %v569, %v570
    %v572 = vsub.f32 1.0, %v571
    %v573 = vmul.f32 %v570, %v572
    %v574 = vadd.f32 %v570, %v573
    %vm575 = vweird.f32 %v569
    %vm576 = vweird.f32 %v570
    %vm577 = vmor %vm575, %vm576
    %v578 = vsel %vm577, %v570, %v574
    %v579 = vand.u32 2147483647, %v569
    %vm580 = vcmp.eq.f32.partialorder %v579, 8.507059e+37
    %v581 = vand.u32 %v569, 2147483648
    %v582 = vor.u32 1.1754944e-38, %v581
    %v583 = vsel %vm580, %v582, %v578
    %v584 = vmul.f32 1.0, %v583
    %v585 = vadd.f32 %v177, %v543
    %v586 = vxor.u32 %v585, 2147483648
    %v587 = vmul.f32 %v586, 1.442695
    %v588 = vpow.pop %v587
    %v589 = vadd.f32 %v588, 1.0
    %v590 = vrcp.pop %v589
    %v591 = vmul.f32 %v589, %v590
    %v592 = vsub.f32 1.0, %v591
    %v593 = vmul.f32 %v590, %v592
    %v594 = vadd.f32 %v590, %v593
    %vm595 = vweird.f32 %v589
    %vm596 = vweird.f32 %v590
    %vm597 = vmor %vm595, %vm596
    %v598 = vsel %vm597, %v590, %v594
    %v599 = vand.u32 2147483647, %v589
    %vm600 = vcmp.eq.f32.partialorder %v599, 8.507059e+37
    %v601 = vand.u32 %v589, 2147483648
    %v602 = vor.u32 1.1754944e-38, %v601
    %v603 = vsel %vm600, %v602, %v598
    %v604 = vmul.f32 1.0, %v603
    %v605 = vmul.f32 %v584, %v563
    %v606 = vadd.f32 %v218, %v605
    %v607 = vtanh.pop %v606
    %v608 = vsub.f32 1.0, %v604
    %v609 = vmul.f32 %v608, %v607
    %v610 = vmul.f32 %v604, %v504
    %v611 = vadd.f32 %v609, %v610
    %612 = vmatpush.msra.mxu0 %v280
    %613 = vmatpush.msra.mxu0 %v277
    %614 = vmatpush.msra.mxu0 %v274
    %615 = vmatpush.msra.mxu0 %v271
    %616 = vmatpush.msra.mxu0 %v268
    %617 = vmatpush.msra.mxu0 %v265
    %618 = vmatpush.msra.mxu0 %v262
    %619 = vmatpush.msra.mxu0 %v259
    %620 = vmatpush.msra.mxu0 %v256
    %621 = vmatpush.msra.mxu0 %v253
    %622 = vmatpush.msra.mxu0 %v250
    %623 = vmatpush.msra.mxu0 %v247
    %624 = vmatpush.msra.mxu0 %v244
    %625 = vmatpush.msra.mxu0 %v241
    %626 = vmatpush.msra.mxu0 %v238
    %627 = vmatpush.msra.mxu0 %v235
    %628 = vmatmul.f32.gmra.mxu0 %v611
    %v629 = vpop.f32.mrf.mxu0
    %v630 = vadd.f32 %v285, %v629
    %631 = vdwg.mxu0
    %632 = vmatpush.msra.mxu0 %v281
    %633 = vmatpush.msra.mxu0 %v278
    %634 = vmatpush.msra.mxu0 %v275
    %635 = vmatpush.msra.mxu0 %v272
    %636 = vmatpush.msra.mxu0 %v269
    %637 = vmatpush.msra.mxu0 %v266
    %638 = vmatpush.msra.mxu0 %v263
    %639 = vmatpush.msra.mxu0 %v260
    %640 = vmatpush.msra.mxu0 %v257
    %641 = vmatpush.msra.mxu0 %v254
    %642 = vmatpush.msra.mxu0 %v251
    %643 = vmatpush.msra.mxu0 %v248
    %644 = vmatpush.msra.mxu0 %v245
    %645 = vmatpush.msra.mxu0 %v242
    %646 = vmatpush.msra.mxu0 %v239
    %647 = vmatpush.msra.mxu0 %v236
    %648 = vmatmul.f32.gmra.mxu0 %v611
    %v649 = vpop.f32.mrf.mxu0
    %v650 = vadd.f32 %v286, %v649
    %651 = vdwg.mxu0
    %652 = vmatpush.msra.mxu0 %v282
    %653 = vmatpush.msra.mxu0 %v279
    %654 = vmatpush.msra.mxu0 %v276
    %655 = vmatpush.msra.mxu0 %v273
    %656 = vmatpush.msra.mxu0 %v270
    %657 = vmatpush.msra.mxu0 %v267
    %658 = vmatpush.msra.mxu0 %v264
    %659 = vmatpush.msra.mxu0 %v261
    %660 = vmatpush.msra.mxu0 %v258
    %661 = vmatpush.msra.mxu0 %v255
    %662 = vmatpush.msra.mxu0 %v252
    %663 = vmatpush.msra.mxu0 %v249
    %664 = vmatpush.msra.mxu0 %v246
    %665 = vmatpush.msra.mxu0 %v243
    %666 = vmatpush.msra.mxu0 %v240
    %667 = vmatpush.msra.mxu0 %v237
    %668 = vmatmul.f32.gmra.mxu0 %v611
    %v669 = vpop.f32.mrf.mxu0
    %v670 = vadd.f32 %v287, %v669
    %671 = vdwg.mxu0
    %v672 = vadd.f32 %v139, %v630
    %v673 = vxor.u32 %v672, 2147483648
    %v674 = vmul.f32 %v673, 1.442695
    %v675 = vpow.pop %v674
    %v676 = vadd.f32 %v675, 1.0
    %v677 = vrcp.pop %v676
    %v678 = vmul.f32 %v676, %v677
    %v679 = vsub.f32 1.0, %v678
    %v680 = vmul.f32 %v677, %v679
    %v681 = vadd.f32 %v677, %v680
    %vm682 = vweird.f32 %v676
    %vm683 = vweird.f32 %v677
    %vm684 = vmor %vm682, %vm683
    %v685 = vsel %vm684, %v677, %v681
    %v686 = vand.u32 2147483647, %v676
    %vm687 = vcmp.eq.f32.partialorder %v686, 8.507059e+37
    %v688 = vand.u32 %v676, 2147483648
    %v689 = vor.u32 1.1754944e-38, %v688
    %v690 = vsel %vm687, %v689, %v685
    %v691 = vmul.f32 1.0, %v690
    %v692 = vadd.f32 %v180, %v650
    %v693 = vxor.u32 %v692, 2147483648
    %v694 = vmul.f32 %v693, 1.442695
    %v695 = vpow.pop %v694
    %v696 = vadd.f32 %v695, 1.0
    %v697 = vrcp.pop %v696
    %v698 = vmul.f32 %v696, %v697
    %v699 = vsub.f32 1.0, %v698
    %v700 = vmul.f32 %v697, %v699
    %v701 = vadd.f32 %v697, %v700
    %vm702 = vweird.f32 %v696
    %vm703 = vweird.f32 %v697
    %vm704 = vmor %vm702, %vm703
    %v705 = vsel %vm704, %v697, %v701
    %v706 = vand.u32 2147483647, %v696
    %vm707 = vcmp.eq.f32.partialorder %v706, 8.507059e+37
    %v708 = vand.u32 %v696, 2147483648
    %v709 = vor.u32 1.1754944e-38, %v708
    %v710 = vsel %vm707, %v709, %v705
    %v711 = vmul.f32 1.0, %v710
    %v712 = vmul.f32 %v691, %v670
    %v713 = vadd.f32 %v221, %v712
    %v714 = vtanh.pop %v713
    %v715 = vsub.f32 1.0, %v711
    %v716 = vmul.f32 %v715, %v714
    %v717 = vmul.f32 %v711, %v611
    %v718 = vadd.f32 %v716, %v717
    %719 = vmatpush.msra.mxu0 %v280
    %720 = vmatpush.msra.mxu0 %v277
    %721 = vmatpush.msra.mxu0 %v274
    %722 = vmatpush.msra.mxu0 %v271
    %723 = vmatpush.msra.mxu0 %v268
    %724 = vmatpush.msra.mxu0 %v265
    %725 = vmatpush.msra.mxu0 %v262
    %726 = vmatpush.msra.mxu0 %v259
    %727 = vmatpush.msra.mxu0 %v256
    %728 = vmatpush.msra.mxu0 %v253
    %729 = vmatpush.msra.mxu0 %v250
    %730 = vmatpush.msra.mxu0 %v247
    %731 = vmatpush.msra.mxu0 %v244
    %732 = vmatpush.msra.mxu0 %v241
    %733 = vmatpush.msra.mxu0 %v238
    %734 = vmatpush.msra.mxu0 %v235
    %735 = vmatmul.f32.gmra.mxu0 %v718
    %v736 = vpop.f32.mrf.mxu0
    %v737 = vadd.f32 %v285, %v736
    %738 = vdwg.mxu0
    %739 = vmatpush.msra.mxu0 %v281
    %740 = vmatpush.msra.mxu0 %v278
    %741 = vmatpush.msra.mxu0 %v275
    %742 = vmatpush.msra.mxu0 %v272
    %743 = vmatpush.msra.mxu0 %v269
    %744 = vmatpush.msra.mxu0 %v266
    %745 = vmatpush.msra.mxu0 %v263
    %746 = vmatpush.msra.mxu0 %v260
    %747 = vmatpush.msra.mxu0 %v257
    %748 = vmatpush.msra.mxu0 %v254
    %749 = vmatpush.msra.mxu0 %v251
    %750 = vmatpush.msra.mxu0 %v248
    %751 = vmatpush.msra.mxu0 %v245
    %752 = vmatpush.msra.mxu0 %v242
    %753 = vmatpush.msra.mxu0 %v239
    %754 = vmatpush.msra.mxu0 %v236
    %755 = vmatmul.f32.gmra.mxu0 %v718
    %v756 = vpop.f32.mrf.mxu0
    %v757 = vadd.f32 %v286, %v756
    %758 = vdwg.mxu0
    %759 = vmatpush.msra.mxu0 %v282
    %760 = vmatpush.msra.mxu0 %v279
    %761 = vmatpush.msra.mxu0 %v276
    %762 = vmatpush.msra.mxu0 %v273
    %763 = vmatpush.msra.mxu0 %v270
    %764 = vmatpush.msra.mxu0 %v267
    %765 = vmatpush.msra.mxu0 %v264
    %766 = vmatpush.msra.mxu0 %v261
    %767 = vmatpush.msra.mxu0 %v258
    %768 = vmatpush.msra.mxu0 %v255
    %769 = vmatpush.msra.mxu0 %v252
    %770 = vmatpush.msra.mxu0 %v249
    %771 = vmatpush.msra.mxu0 %v246
    %772 = vmatpush.msra.mxu0 %v243
    %773 = vmatpush.msra.mxu0 %v240
    %774 = vmatpush.msra.mxu0 %v237
    %775 = vmatmul.f32.gmra.mxu0 %v718
    %v776 = vpop.f32.mrf.mxu0
    %v777 = vadd.f32 %v287, %v776
    %778 = vdwg.mxu0
    %v779 = vadd.f32 %v142, %v737
    %v780 = vxor.u32 %v779, 2147483648
    %v781 = vmul.f32 %v780, 1.442695
    %v782 = vpow.pop %v781
    %v783 = vadd.f32 %v782, 1.0
    %v784 = vrcp.pop %v783
    %v785 = vmul.f32 %v783, %v784
    %v786 = vsub.f32 1.0, %v785
    %v787 = vmul.f32 %v784, %v786
    %v788 = vadd.f32 %v784, %v787
    %vm789 = vweird.f32 %v783
    %vm790 = vweird.f32 %v784
    %vm791 = vmor %vm789, %vm790
    %v792 = vsel %vm791, %v784, %v788
    %v793 = vand.u32 2147483647, %v783
    %vm794 = vcmp.eq.f32.partialorder %v793, 8.507059e+37
    %v795 = vand.u32 %v783, 2147483648
    %v796 = vor.u32 1.1754944e-38, %v795
    %v797 = vsel %vm794, %v796, %v792
    %v798 = vmul.f32 1.0, %v797
    %v799 = vadd.f32 %v183, %v757
    %v800 = vxor.u32 %v799, 2147483648
    %v801 = vmul.f32 %v800, 1.442695
    %v802 = vpow.pop %v801
    %v803 = vadd.f32 %v802, 1.0
    %v804 = vrcp.pop %v803
    %v805 = vmul.f32 %v803, %v804
    %v806 = vsub.f32 1.0, %v805
    %v807 = vmul.f32 %v804, %v806
    %v808 = vadd.f32 %v804, %v807
    %vm809 = vweird.f32 %v803
    %vm810 = vweird.f32 %v804
    %vm811 = vmor %vm809, %vm810
    %v812 = vsel %vm811, %v804, %v808
    %v813 = vand.u32 2147483647, %v803
    %vm814 = vcmp.eq.f32.partialorder %v813, 8.507059e+37
    %v815 = vand.u32 %v803, 2147483648
    %v816 = vor.u32 1.1754944e-38, %v815
    %v817 = vsel %vm814, %v816, %v812
    %v818 = vmul.f32 1.0, %v817
    %v819 = vmul.f32 %v798, %v777
    %v820 = vadd.f32 %v224, %v819
    %v821 = vtanh.pop %v820
    %v822 = vsub.f32 1.0, %v818
    %v823 = vmul.f32 %v822, %v821
    %v824 = vmul.f32 %v818, %v718
    %v825 = vadd.f32 %v823, %v824
    %826 = vmatpush.msra.mxu0 %v280
    %827 = vmatpush.msra.mxu0 %v277
    %828 = vmatpush.msra.mxu0 %v274
    %829 = vmatpush.msra.mxu0 %v271
    %830 = vmatpush.msra.mxu0 %v268
    %831 = vmatpush.msra.mxu0 %v265
    %832 = vmatpush.msra.mxu0 %v262
    %833 = vmatpush.msra.mxu0 %v259
    %834 = vmatpush.msra.mxu0 %v256
    %835 = vmatpush.msra.mxu0 %v253
    %836 = vmatpush.msra.mxu0 %v250
    %837 = vmatpush.msra.mxu0 %v247
    %838 = vmatpush.msra.mxu0 %v244
    %839 = vmatpush.msra.mxu0 %v241
    %840 = vmatpush.msra.mxu0 %v238
    %841 = vmatpush.msra.mxu0 %v235
    %842 = vmatmul.f32.gmra.mxu0 %v825
    %v843 = vpop.f32.mrf.mxu0
    %v844 = vadd.f32 %v285, %v843
    %845 = vdwg.mxu0
    %846 = vmatpush.msra.mxu0 %v281
    %847 = vmatpush.msra.mxu0 %v278
    %848 = vmatpush.msra.mxu0 %v275
    %849 = vmatpush.msra.mxu0 %v272
    %850 = vmatpush.msra.mxu0 %v269
    %851 = vmatpush.msra.mxu0 %v266
    %852 = vmatpush.msra.mxu0 %v263
    %853 = vmatpush.msra.mxu0 %v260
    %854 = vmatpush.msra.mxu0 %v257
    %855 = vmatpush.msra.mxu0 %v254
    %856 = vmatpush.msra.mxu0 %v251
    %857 = vmatpush.msra.mxu0 %v248
    %858 = vmatpush.msra.mxu0 %v245
    %859 = vmatpush.msra.mxu0 %v242
    %860 = vmatpush.msra.mxu0 %v239
    %861 = vmatpush.msra.mxu0 %v236
    %862 = vmatmul.f32.gmra.mxu0 %v825
    %v863 = vpop.f32.mrf.mxu0
    %v864 = vadd.f32 %v286, %v863
    %865 = vdwg.mxu0
    %866 = vmatpush.msra.mxu0 %v282
    %867 = vmatpush.msra.mxu0 %v279
    %868 = vmatpush.msra.mxu0 %v276
    %869 = vmatpush.msra.mxu0 %v273
    %870 = vmatpush.msra.mxu0 %v270
    %871 = vmatpush.msra.mxu0 %v267
    %872 = vmatpush.msra.mxu0 %v264
    %873 = vmatpush.msra.mxu0 %v261
    %874 = vmatpush.msra.mxu0 %v258
    %875 = vmatpush.msra.mxu0 %v255
    %876 = vmatpush.msra.mxu0 %v252
    %877 = vmatpush.msra.mxu0 %v249
    %878 = vmatpush.msra.mxu0 %v246
    %879 = vmatpush.msra.mxu0 %v243
    %880 = vmatpush.msra.mxu0 %v240
    %881 = vmatpush.msra.mxu0 %v237
    %882 = vmatmul.f32.gmra.mxu0 %v825
    %v883 = vpop.f32.mrf.mxu0
    %v884 = vadd.f32 %v287, %v883
    %885 = vdwg.mxu0
    %v886 = vadd.f32 %v145, %v844
    %v887 = vxor.u32 %v886, 2147483648
    %v888 = vmul.f32 %v887, 1.442695
    %v889 = vpow.pop %v888
    %v890 = vadd.f32 %v889, 1.0
    %v891 = vrcp.pop %v890
    %v892 = vmul.f32 %v890, %v891
    %v893 = vsub.f32 1.0, %v892
    %v894 = vmul.f32 %v891, %v893
    %v895 = vadd.f32 %v891, %v894
    %vm896 = vweird.f32 %v890
    %vm897 = vweird.f32 %v891
    %vm898 = vmor %vm896, %vm897
    %v899 = vsel %vm898, %v891, %v895
    %v900 = vand.u32 2147483647, %v890
    %vm901 = vcmp.eq.f32.partialorder %v900, 8.507059e+37
    %v902 = vand.u32 %v890, 2147483648
    %v903 = vor.u32 1.1754944e-38, %v902
    %v904 = vsel %vm901, %v903, %v899
    %v905 = vmul.f32 1.0, %v904
    %v906 = vadd.f32 %v186, %v864
    %v907 = vxor.u32 %v906, 2147483648
    %v908 = vmul.f32 %v907, 1.442695
    %v909 = vpow.pop %v908
    %v910 = vadd.f32 %v909, 1.0
    %v911 = vrcp.pop %v910
    %v912 = vmul.f32 %v910, %v911
    %v913 = vsub.f32 1.0, %v912
    %v914 = vmul.f32 %v911, %v913
    %v915 = vadd.f32 %v911, %v914
    %vm916 = vweird.f32 %v910
    %vm917 = vweird.f32 %v911
    %vm918 = vmor %vm916, %vm917
    %v919 = vsel %vm918, %v911, %v915
    %v920 = vand.u32 2147483647, %v910
    %vm921 = vcmp.eq.f32.partialorder %v920, 8.507059e+37
    %v922 = vand.u32 %v910, 2147483648
    %v923 = vor.u32 1.1754944e-38, %v922
    %v924 = vsel %vm921, %v923, %v919
    %v925 = vmul.f32 1.0, %v924
    %v926 = vmul.f32 %v905, %v884
    %v927 = vadd.f32 %v227, %v926
    %v928 = vtanh.pop %v927
    %v929 = vsub.f32 1.0, %v925
    %v930 = vmul.f32 %v929, %v928
    %v931 = vmul.f32 %v925, %v825
    %v932 = vadd.f32 %v930, %v931
    %933 = vmatpush.msra.mxu0 %v280
    %934 = vmatpush.msra.mxu0 %v277
    %935 = vmatpush.msra.mxu0 %v274
    %936 = vmatpush.msra.mxu0 %v271
    %937 = vmatpush.msra.mxu0 %v268
    %938 = vmatpush.msra.mxu0 %v265
    %939 = vmatpush.msra.mxu0 %v262
    %940 = vmatpush.msra.mxu0 %v259
    %941 = vmatpush.msra.mxu0 %v256
    %942 = vmatpush.msra.mxu0 %v253
    %943 = vmatpush.msra.mxu0 %v250
    %944 = vmatpush.msra.mxu0 %v247
    %945 = vmatpush.msra.mxu0 %v244
    %946 = vmatpush.msra.mxu0 %v241
    %947 = vmatpush.msra.mxu0 %v238
    %948 = vmatpush.msra.mxu0 %v235
    %949 = vmatmul.f32.gmra.mxu0 %v932
    %v950 = vpop.f32.mrf.mxu0
    %v951 = vadd.f32 %v285, %v950
    %952 = vdwg.mxu0
    %953 = vmatpush.msra.mxu0 %v281
    %954 = vmatpush.msra.mxu0 %v278
    %955 = vmatpush.msra.mxu0 %v275
    %956 = vmatpush.msra.mxu0 %v272
    %957 = vmatpush.msra.mxu0 %v269
    %958 = vmatpush.msra.mxu0 %v266
    %959 = vmatpush.msra.mxu0 %v263
    %960 = vmatpush.msra.mxu0 %v260
    %961 = vmatpush.msra.mxu0 %v257
    %962 = vmatpush.msra.mxu0 %v254
    %963 = vmatpush.msra.mxu0 %v251
    %964 = vmatpush.msra.mxu0 %v248
    %965 = vmatpush.msra.mxu0 %v245
    %966 = vmatpush.msra.mxu0 %v242
    %967 = vmatpush.msra.mxu0 %v239
    %968 = vmatpush.msra.mxu0 %v236
    %969 = vmatmul.f32.gmra.mxu0 %v932
    %v970 = vpop.f32.mrf.mxu0
    %v971 = vadd.f32 %v286, %v970
    %972 = vdwg.mxu0
    %973 = vmatpush.msra.mxu0 %v282
    %974 = vmatpush.msra.mxu0 %v279
    %975 = vmatpush.msra.mxu0 %v276
    %976 = vmatpush.msra.mxu0 %v273
    %977 = vmatpush.msra.mxu0 %v270
    %978 = vmatpush.msra.mxu0 %v267
    %979 = vmatpush.msra.mxu0 %v264
    %980 = vmatpush.msra.mxu0 %v261
    %981 = vmatpush.msra.mxu0 %v258
    %982 = vmatpush.msra.mxu0 %v255
    %983 = vmatpush.msra.mxu0 %v252
    %984 = vmatpush.msra.mxu0 %v249
    %985 = vmatpush.msra.mxu0 %v246
    %986 = vmatpush.msra.mxu0 %v243
    %987 = vmatpush.msra.mxu0 %v240
    %988 = vmatpush.msra.mxu0 %v237
    %989 = vmatmul.f32.gmra.mxu0 %v932
    %v990 = vpop.f32.mrf.mxu0
    %v991 = vadd.f32 %v287, %v990
    %992 = vdwg.mxu0
    %v993 = vadd.f32 %v148, %v951
    %v994 = vxor.u32 %v993, 2147483648
    %v995 = vmul.f32 %v994, 1.442695
    %v996 = vpow.pop %v995
    %v997 = vadd.f32 %v996, 1.0
    %v998 = vrcp.pop %v997
    %v999 = vmul.f32 %v997, %v998
    %v1000 = vsub.f32 1.0, %v999
    %v1001 = vmul.f32 %v998, %v1000
    %v1002 = vadd.f32 %v998, %v1001
    %vm1003 = vweird.f32 %v997
    %vm1004 = vweird.f32 %v998
    %vm1005 = vmor %vm1003, %vm1004
    %v1006 = vsel %vm1005, %v998, %v1002
    %v1007 = vand.u32 2147483647, %v997
    %vm1008 = vcmp.eq.f32.partialorder %v1007, 8.507059e+37
    %v1009 = vand.u32 %v997, 2147483648
    %v1010 = vor.u32 1.1754944e-38, %v1009
    %v1011 = vsel %vm1008, %v1010, %v1006
    %v1012 = vmul.f32 1.0, %v1011
    %v1013 = vadd.f32 %v189, %v971
    %v1014 = vxor.u32 %v1013, 2147483648
    %v1015 = vmul.f32 %v1014, 1.442695
    %v1016 = vpow.pop %v1015
    %v1017 = vadd.f32 %v1016, 1.0
    %v1018 = vrcp.pop %v1017
    %v1019 = vmul.f32 %v1017, %v1018
    %v1020 = vsub.f32 1.0, %v1019
    %v1021 = vmul.f32 %v1018, %v1020
    %v1022 = vadd.f32 %v1018, %v1021
    %vm1023 = vweird.f32 %v1017
    %vm1024 = vweird.f32 %v1018
    %vm1025 = vmor %vm1023, %vm1024
    %v1026 = vsel %vm1025, %v1018, %v1022
    %v1027 = vand.u32 2147483647, %v1017
    %vm1028 = vcmp.eq.f32.partialorder %v1027, 8.507059e+37
    %v1029 = vand.u32 %v1017, 2147483648
    %v1030 = vor.u32 1.1754944e-38, %v1029
    %v1031 = vsel %vm1028, %v1030, %v1026
    %v1032 = vmul.f32 1.0, %v1031
    %v1033 = vmul.f32 %v1012, %v991
    %v1034 = vadd.f32 %v230, %v1033
    %v1035 = vtanh.pop %v1034
    %v1036 = vsub.f32 1.0, %v1032
    %v1037 = vmul.f32 %v1036, %v1035
    %v1038 = vmul.f32 %v1032, %v932
    %v1039 = vadd.f32 %v1037, %v1038
    %1040 = vmatpush.msra.mxu0 %v280
    %1041 = vmatpush.msra.mxu0 %v277
    %1042 = vmatpush.msra.mxu0 %v274
    %1043 = vmatpush.msra.mxu0 %v271
    %1044 = vmatpush.msra.mxu0 %v268
    %1045 = vmatpush.msra.mxu0 %v265
    %1046 = vmatpush.msra.mxu0 %v262
    %1047 = vmatpush.msra.mxu0 %v259
    %1048 = vmatpush.msra.mxu0 %v256
    %1049 = vmatpush.msra.mxu0 %v253
    %1050 = vmatpush.msra.mxu0 %v250
    %1051 = vmatpush.msra.mxu0 %v247
    %1052 = vmatpush.msra.mxu0 %v244
    %1053 = vmatpush.msra.mxu0 %v241
    %1054 = vmatpush.msra.mxu0 %v238
    %1055 = vmatpush.msra.mxu0 %v235
    %1056 = vmatmul.f32.gmra.mxu0 %v1039
    %v1057 = vpop.f32.mrf.mxu0
    %v1058 = vadd.f32 %v285, %v1057
    %1059 = vdwg.mxu0
    %1060 = vmatpush.msra.mxu0 %v281
    %1061 = vmatpush.msra.mxu0 %v278
    %1062 = vmatpush.msra.mxu0 %v275
    %1063 = vmatpush.msra.mxu0 %v272
    %1064 = vmatpush.msra.mxu0 %v269
    %1065 = vmatpush.msra.mxu0 %v266
    %1066 = vmatpush.msra.mxu0 %v263
    %1067 = vmatpush.msra.mxu0 %v260
    %1068 = vmatpush.msra.mxu0 %v257
    %1069 = vmatpush.msra.mxu0 %v254
    %1070 = vmatpush.msra.mxu0 %v251
    %1071 = vmatpush.msra.mxu0 %v248
    %1072 = vmatpush.msra.mxu0 %v245
    %1073 = vmatpush.msra.mxu0 %v242
    %1074 = vmatpush.msra.mxu0 %v239
    %1075 = vmatpush.msra.mxu0 %v236
    %1076 = vmatmul.f32.gmra.mxu0 %v1039
    %v1077 = vpop.f32.mrf.mxu0
    %v1078 = vadd.f32 %v286, %v1077
    %1079 = vdwg.mxu0
    %1080 = vmatpush.msra.mxu0 %v282
    %1081 = vmatpush.msra.mxu0 %v279
    %1082 = vmatpush.msra.mxu0 %v276
    %1083 = vmatpush.msra.mxu0 %v273
    %1084 = vmatpush.msra.mxu0 %v270
    %1085 = vmatpush.msra.mxu0 %v267
    %1086 = vmatpush.msra.mxu0 %v264
    %1087 = vmatpush.msra.mxu0 %v261
    %1088 = vmatpush.msra.mxu0 %v258
    %1089 = vmatpush.msra.mxu0 %v255
    %1090 = vmatpush.msra.mxu0 %v252
    %1091 = vmatpush.msra.mxu0 %v249
    %1092 = vmatpush.msra.mxu0 %v246
    %1093 = vmatpush.msra.mxu0 %v243
    %1094 = vmatpush.msra.mxu0 %v240
    %1095 = vmatpush.msra.mxu0 %v237
    %1096 = vmatmul.f32.gmra.mxu0 %v1039
    %v1097 = vpop.f32.mrf.mxu0
    %v1098 = vadd.f32 %v287, %v1097
    %1099 = vdwg.mxu0
    %v1100 = vadd.f32 %v151, %v1058
    %v1101 = vxor.u32 %v1100, 2147483648
    %v1102 = vmul.f32 %v1101, 1.442695
    %v1103 = vpow.pop %v1102
    %v1104 = vadd.f32 %v1103, 1.0
    %v1105 = vrcp.pop %v1104
    %v1106 = vmul.f32 %v1104, %v1105
    %v1107 = vsub.f32 1.0, %v1106
    %v1108 = vmul.f32 %v1105, %v1107
    %v1109 = vadd.f32 %v1105, %v1108
    %vm1110 = vweird.f32 %v1104
    %vm1111 = vweird.f32 %v1105
    %vm1112 = vmor %vm1110, %vm1111
    %v1113 = vsel %vm1112, %v1105, %v1109
    %v1114 = vand.u32 2147483647, %v1104
    %vm1115 = vcmp.eq.f32.partialorder %v1114, 8.507059e+37
    %v1116 = vand.u32 %v1104, 2147483648
    %v1117 = vor.u32 1.1754944e-38, %v1116
    %v1118 = vsel %vm1115, %v1117, %v1113
    %v1119 = vmul.f32 1.0, %v1118
    %v1120 = vadd.f32 %v192, %v1078
    %v1121 = vxor.u32 %v1120, 2147483648
    %v1122 = vmul.f32 %v1121, 1.442695
    %v1123 = vpow.pop %v1122
    %v1124 = vadd.f32 %v1123, 1.0
    %v1125 = vrcp.pop %v1124
    %v1126 = vmul.f32 %v1124, %v1125
    %v1127 = vsub.f32 1.0, %v1126
    %v1128 = vmul.f32 %v1125, %v1127
    %v1129 = vadd.f32 %v1125, %v1128
    %vm1130 = vweird.f32 %v1124
    %vm1131 = vweird.f32 %v1125
    %vm1132 = vmor %vm1130, %vm1131
    %v1133 = vsel %vm1132, %v1125, %v1129
    %v1134 = vand.u32 2147483647, %v1124
    %vm1135 = vcmp.eq.f32.partialorder %v1134, 8.507059e+37
    %v1136 = vand.u32 %v1124, 2147483648
    %v1137 = vor.u32 1.1754944e-38, %v1136
    %v1138 = vsel %vm1135, %v1137, %v1133
    %v1139 = vmul.f32 1.0, %v1138
    %v1140 = vmul.f32 %v1119, %v1098
    %v1141 = vadd.f32 %v233, %v1140
    %v1142 = vtanh.pop %v1141
    %v1143 = vsub.f32 1.0, %v1139
    %v1144 = vmul.f32 %v1143, %v1142
    %v1145 = vmul.f32 %v1139, %v1039
    %v1146 = vadd.f32 %v1144, %v1145
    %v1147 = vld [vmem:[%s6] sm:$0xff]
    %v1148 = vld [vmem:[%s6 + $0x8] sm:$0xff]
    %v1149 = vld [vmem:[%s6 + $0x10] sm:$0xff]
    %v1150 = vld [vmem:[%s6 + $0x18] sm:$0xff]
    %v1151 = vld [vmem:[%s6 + $0x20] sm:$0xff]
    %v1152 = vld [vmem:[%s6 + $0x28] sm:$0xff]
    %v1153 = vld [vmem:[%s6 + $0x30] sm:$0xff]
    %v1154 = vld [vmem:[%s6 + $0x38] sm:$0xff]
    %v1155 = vld [vmem:[%s6 + $0x40] sm:$0xff]
    %v1156 = vld [vmem:[%s6 + $0x48] sm:$0xff]
    %v1157 = vld [vmem:[%s6 + $0x50] sm:$0xff]
    %v1158 = vld [vmem:[%s6 + $0x58] sm:$0xff]
    %v1159 = vld [vmem:[%s6 + $0x60] sm:$0xff]
    %v1160 = vld [vmem:[%s6 + $0x68] sm:$0xff]
    %v1161 = vld [vmem:[%s6 + $0x70] sm:$0xff]
    %v1162 = vld [vmem:[%s6 + $0x78] sm:$0xff]
    %v1163 = vld [vmem:[%s7] sm:$0x1]
    %v1165 = vperm.slane %v1163, 0
    %1167 = vmatpush.msra.mxu0 %v1162
    %1168 = vmatpush.msra.mxu0 %v1161
    %1169 = vmatpush.msra.mxu0 %v1160
    %1170 = vmatpush.msra.mxu0 %v1159
    %1171 = vmatpush.msra.mxu0 %v1158
    %1172 = vmatpush.msra.mxu0 %v1157
    %1173 = vmatpush.msra.mxu0 %v1156
    %1174 = vmatpush.msra.mxu0 %v1155
    %1175 = vmatpush.msra.mxu0 %v1154
    %1176 = vmatpush.msra.mxu0 %v1153
    %1177 = vmatpush.msra.mxu0 %v1152
    %1178 = vmatpush.msra.mxu0 %v1151
    %1179 = vmatpush.msra.mxu0 %v1150
    %1180 = vmatpush.msra.mxu0 %v1149
    %1181 = vmatpush.msra.mxu0 %v1148
    %1182 = vmatpush.msra.mxu0 %v1147
    %1183 = vmatmul.f32.gmra.mxu0 %v1146
    %v1184 = vpop.f32.mrf.mxu0
    %v1185 = vadd.f32 %v1165, %v1184
    %1186 = vdwg.mxu0
    %v1187 = vmax.f32 %v1185, 0.0
    %v1188 = vld [vmem:[%s1] sm:$0xff]
    %v1189 = vld [vmem:[%s8] sm:$0xff]
    %v1190 = vld [vmem:[%s8 + $0x8] sm:$0xff]
    %v1191 = vld [vmem:[%s8 + $0x10] sm:$0xff]
    %v1192 = vld [vmem:[%s8 + $0x18] sm:$0xff]
    %v1193 = vld [vmem:[%s8 + $0x20] sm:$0xff]
    %v1194 = vld [vmem:[%s8 + $0x28] sm:$0xff]
    %v1195 = vld [vmem:[%s8 + $0x30] sm:$0xff]
    %v1196 = vld [vmem:[%s8 + $0x38] sm:$0xff]
    %v1197 = vld [vmem:[%s8 + $0x40] sm:$0xff]
    %v1198 = vld [vmem:[%s8 + $0x48] sm:$0xff]
    %v1199 = vld [vmem:[%s8 + $0x50] sm:$0xff]
    %v1200 = vld [vmem:[%s8 + $0x58] sm:$0xff]
    %v1201 = vld [vmem:[%s8 + $0x60] sm:$0xff]
    %v1202 = vld [vmem:[%s8 + $0x68] sm:$0xff]
    %v1203 = vld [vmem:[%s8 + $0x70] sm:$0xff]
    %v1204 = vld [vmem:[%s8 + $0x78] sm:$0xff]
    %v1205 = vld [vmem:[%s9] sm:$0x1]
    %v1207 = vperm.slane %v1205, 0
    %1209 = vmatpush.msra.mxu0 %v1204
    %1210 = vmatpush.msra.mxu0 %v1203
    %1211 = vmatpush.msra.mxu0 %v1202
    %1212 = vmatpush.msra.mxu0 %v1201
    %1213 = vmatpush.msra.mxu0 %v1200
    %1214 = vmatpush.msra.mxu0 %v1199
    %1215 = vmatpush.msra.mxu0 %v1198
    %1216 = vmatpush.msra.mxu0 %v1197
    %1217 = vmatpush.msra.mxu0 %v1196
    %1218 = vmatpush.msra.mxu0 %v1195
    %1219 = vmatpush.msra.mxu0 %v1194
    %1220 = vmatpush.msra.mxu0 %v1193
    %1221 = vmatpush.msra.mxu0 %v1192
    %1222 = vmatpush.msra.mxu0 %v1191
    %1223 = vmatpush.msra.mxu0 %v1190
    %1224 = vmatpush.msra.mxu0 %v1189
    %1225 = vmatmul.f32.gmra.mxu0 %v1188
    %v1226 = vpop.f32.mrf.mxu0
    %v1227 = vadd.f32 %v1207, %v1226
    %1228 = vdwg.mxu0
    %v1229 = vmax.f32 %v1227, 0.0
    %v1230 = vmul.f32 %v1187, %v1229
    %v1231 = vld [vmem:[%s10] sm:$0xff]
    %v1232 = vld [vmem:[%s10 + $0x8] sm:$0xff]
    %v1233 = vld [vmem:[%s10 + $0x10] sm:$0xff]
    %v1234 = vld [vmem:[%s10 + $0x18] sm:$0xff]
    %v1235 = vld [vmem:[%s10 + $0x20] sm:$0xff]
    %v1236 = vld [vmem:[%s10 + $0x28] sm:$0xff]
    %v1237 = vld [vmem:[%s10 + $0x30] sm:$0xff]
    %v1238 = vld [vmem:[%s10 + $0x38] sm:$0xff]
    %v1239 = vld [vmem:[%s10 + $0x40] sm:$0xff]
    %v1240 = vld [vmem:[%s10 + $0x48] sm:$0xff]
    %v1241 = vld [vmem:[%s10 + $0x50] sm:$0xff]
    %v1242 = vld [vmem:[%s10 + $0x58] sm:$0xff]
    %v1243 = vld [vmem:[%s10 + $0x60] sm:$0xff]
    %v1244 = vld [vmem:[%s10 + $0x68] sm:$0xff]
    %v1245 = vld [vmem:[%s10 + $0x70] sm:$0xff]
    %v1246 = vld [vmem:[%s10 + $0x78] sm:$0xff]
    %v1247 = vld [vmem:[%s10 + $0x80] sm:$0xff]
    %v1248 = vld [vmem:[%s10 + $0x88] sm:$0xff]
    %v1249 = vld [vmem:[%s10 + $0x90] sm:$0xff]
    %v1250 = vld [vmem:[%s10 + $0x98] sm:$0xff]
    %v1251 = vld [vmem:[%s10 + $0xa0] sm:$0xff]
    %v1252 = vld [vmem:[%s10 + $0xa8] sm:$0xff]
    %v1253 = vld [vmem:[%s10 + $0xb0] sm:$0xff]
    %v1254 = vld [vmem:[%s10 + $0xb8] sm:$0xff]
    %v1255 = vld [vmem:[%s10 + $0xc0] sm:$0xff]
    %v1256 = vld [vmem:[%s10 + $0xc8] sm:$0xff]
    %v1257 = vld [vmem:[%s10 + $0xd0] sm:$0xff]
    %v1258 = vld [vmem:[%s10 + $0xd8] sm:$0xff]
    %v1259 = vld [vmem:[%s10 + $0xe0] sm:$0xff]
    %v1260 = vld [vmem:[%s10 + $0xe8] sm:$0xff]
    %v1261 = vld [vmem:[%s10 + $0xf0] sm:$0xff]
    %v1262 = vld [vmem:[%s10 + $0xf8] sm:$0xff]
    %v1263 = vld [vmem:[%s11] sm:$0x3]
    %v1265 = vperm.slane %v1263, 0
    %v1266 = vperm.slane %v1263, 1
    %1269 = vmatpush.msra.mxu0 %v1261
    %1270 = vmatpush.msra.mxu0 %v1259
    %1271 = vmatpush.msra.mxu0 %v1257
    %1272 = vmatpush.msra.mxu0 %v1255
    %1273 = vmatpush.msra.mxu0 %v1253
    %1274 = vmatpush.msra.mxu0 %v1251
    %1275 = vmatpush.msra.mxu0 %v1249
    %1276 = vmatpush.msra.mxu0 %v1247
    %1277 = vmatpush.msra.mxu0 %v1245
    %1278 = vmatpush.msra.mxu0 %v1243
    %1279 = vmatpush.msra.mxu0 %v1241
    %1280 = vmatpush.msra.mxu0 %v1239
    %1281 = vmatpush.msra.mxu0 %v1237
    %1282 = vmatpush.msra.mxu0 %v1235
    %1283 = vmatpush.msra.mxu0 %v1233
    %1284 = vmatpush.msra.mxu0 %v1231
    %1285 = vmatmul.f32.gmra.mxu0 %v1230
    %v1286 = vpop.f32.mrf.mxu0
    %v1287 = vadd.f32 %v1265, %v1286
    %1288 = vdwg.mxu0
    %1289 = vmatpush.msra.mxu0 %v1262
    %1290 = vmatpush.msra.mxu0 %v1260
    %1291 = vmatpush.msra.mxu0 %v1258
    %1292 = vmatpush.msra.mxu0 %v1256
    %1293 = vmatpush.msra.mxu0 %v1254
    %1294 = vmatpush.msra.mxu0 %v1252
    %1295 = vmatpush.msra.mxu0 %v1250
    %1296 = vmatpush.msra.mxu0 %v1248
    %1297 = vmatpush.msra.mxu0 %v1246
    %1298 = vmatpush.msra.mxu0 %v1244
    %1299 = vmatpush.msra.mxu0 %v1242
    %1300 = vmatpush.msra.mxu0 %v1240
    %1301 = vmatpush.msra.mxu0 %v1238
    %1302 = vmatpush.msra.mxu0 %v1236
    %1303 = vmatpush.msra.mxu0 %v1234
    %1304 = vmatpush.msra.mxu0 %v1232
    %1305 = vmatmul.f32.gmra.mxu0 %v1230
    %v1306 = vpop.f32.mrf.mxu0
    %v1307 = vadd.f32 %v1266, %v1306
    %1308 = vdwg.mxu0
    %v1309 = vmax.f32 %v1287, 0.0
    %v1310 = vmax.f32 %v1307, 0.0
    %v1311 = vld [vmem:[%s12] sm:$0xff]
    %v1312 = vld [vmem:[%s12 + $0x8] sm:$0xff]
    %v1313 = vld [vmem:[%s12 + $0x10] sm:$0xff]
    %v1314 = vld [vmem:[%s12 + $0x18] sm:$0xff]
    %v1315 = vld [vmem:[%s12 + $0x20] sm:$0xff]
    %v1316 = vld [vmem:[%s12 + $0x28] sm:$0xff]
    %v1317 = vld [vmem:[%s12 + $0x30] sm:$0xff]
    %v1318 = vld [vmem:[%s12 + $0x38] sm:$0xff]
    %v1319 = vld [vmem:[%s12 + $0x40] sm:$0xff]
    %v1320 = vld [vmem:[%s12 + $0x48] sm:$0xff]
    %v1321 = vld [vmem:[%s12 + $0x50] sm:$0xff]
    %v1322 = vld [vmem:[%s12 + $0x58] sm:$0xff]
    %v1323 = vld [vmem:[%s12 + $0x60] sm:$0xff]
    %v1324 = vld [vmem:[%s12 + $0x68] sm:$0xff]
    %v1325 = vld [vmem:[%s12 + $0x70] sm:$0xff]
    %v1326 = vld [vmem:[%s12 + $0x78] sm:$0xff]
    %v1327 = vld [vmem:[%s12 + $0x80] sm:$0xff]
    %v1328 = vld [vmem:[%s12 + $0x88] sm:$0xff]
    %v1329 = vld [vmem:[%s12 + $0x90] sm:$0xff]
    %v1330 = vld [vmem:[%s12 + $0x98] sm:$0xff]
    %v1331 = vld [vmem:[%s12 + $0xa0] sm:$0xff]
    %v1332 = vld [vmem:[%s12 + $0xa8] sm:$0xff]
    %v1333 = vld [vmem:[%s12 + $0xb0] sm:$0xff]
    %v1334 = vld [vmem:[%s12 + $0xb8] sm:$0xff]
    %v1335 = vld [vmem:[%s12 + $0xc0] sm:$0xff]
    %v1336 = vld [vmem:[%s12 + $0xc8] sm:$0xff]
    %v1337 = vld [vmem:[%s12 + $0xd0] sm:$0xff]
    %v1338 = vld [vmem:[%s12 + $0xd8] sm:$0xff]
    %v1339 = vld [vmem:[%s12 + $0xe0] sm:$0xff]
    %v1340 = vld [vmem:[%s12 + $0xe8] sm:$0xff]
    %v1341 = vld [vmem:[%s12 + $0xf0] sm:$0xff]
    %v1342 = vld [vmem:[%s12 + $0xf8] sm:$0xff]
    %v1343 = vld [vmem:[%s13] sm:$0x1]
    %v1345 = vperm.slane %v1343, 0
    %1347 = vmatpush.msra.mxu0 %v1326
    %1348 = vmatpush.msra.mxu0 %v1325
    %1349 = vmatpush.msra.mxu0 %v1324
    %1350 = vmatpush.msra.mxu0 %v1323
    %1351 = vmatpush.msra.mxu0 %v1322
    %1352 = vmatpush.msra.mxu0 %v1321
    %1353 = vmatpush.msra.mxu0 %v1320
    %1354 = vmatpush.msra.mxu0 %v1319
    %1355 = vmatpush.msra.mxu0 %v1318
    %1356 = vmatpush.msra.mxu0 %v1317
    %1357 = vmatpush.msra.mxu0 %v1316
    %1358 = vmatpush.msra.mxu0 %v1315
    %1359 = vmatpush.msra.mxu0 %v1314
    %1360 = vmatpush.msra.mxu0 %v1313
    %1361 = vmatpush.msra.mxu0 %v1312
    %1362 = vmatpush.msra.mxu0 %v1311
    %1363 = vmatmul.f32.gmra.mxu0 %v1309
    %v1364 = vpop.f32.mrf.mxu0
    %v1365 = vadd.f32 %v1345, %v1364
    %1366 = vdwg.mxu0
    %1367 = vmatpush.msra.mxu0 %v1342
    %1368 = vmatpush.msra.mxu0 %v1341
    %1369 = vmatpush.msra.mxu0 %v1340
    %1370 = vmatpush.msra.mxu0 %v1339
    %1371 = vmatpush.msra.mxu0 %v1338
    %1372 = vmatpush.msra.mxu0 %v1337
    %1373 = vmatpush.msra.mxu0 %v1336
    %1374 = vmatpush.msra.mxu0 %v1335
    %1375 = vmatpush.msra.mxu0 %v1334
    %1376 = vmatpush.msra.mxu0 %v1333
    %1377 = vmatpush.msra.mxu0 %v1332
    %1378 = vmatpush.msra.mxu0 %v1331
    %1379 = vmatpush.msra.mxu0 %v1330
    %1380 = vmatpush.msra.mxu0 %v1329
    %1381 = vmatpush.msra.mxu0 %v1328
    %1382 = vmatpush.msra.mxu0 %v1327
    %1383 = vmatmul.f32.gmra.mxu0 %v1310
    %v1384 = vpop.f32.mrf.mxu0
    %v1385 = vadd.f32 %v1365, %v1384
    %1386 = vdwg.mxu0
    %1387 = vst [vmem:[#allocation2] sm:$0xff] %v1385
    // Predicated region
    $region58: #{base_model_forward.1} parent=1 // pred_check
      _
    $region59: #{base_model_forward.1} parent=1 // pred_check_branch
      %1389 = sbr.rel (0) target = $region61
    $region60: #{base_model_forward.1} parent=1 // pred_region
      %1391 = vsyncadd [#allocation3], 0
      %s1393 = sshll.u32 [#allocation2], 4
      %s1394 = int_to_ptr.vmem [resolvable:$true] %s1393
      %s1395 = sshll.u32 %s14, 4
      %s1396 = int_to_ptr.hbm [resolvable:$true] %s1395
      %1398 = dma.vmem_to_hbm [thread:$0]  %s1394, 128, %s1396, [#allocation3]
    $region61: #{base_model_forward.1} parent=1 // pred_fallthru
      _
    // Predicated region
    $region62: #{base_model_forward.1} parent=1 // pred_check
      _
    $region63: #{base_model_forward.1} parent=1 // pred_check_branch
      %1400 = sbr.rel (0) target = $region65
    $region64: #{base_model_forward.1} parent=1 // pred_region
      %1402 = dma.done [#allocation3], 128
    $region65: #{base_model_forward.1} parent=1 // pred_fallthru
      _
    %1403 = vsyncpa [#allocation3], 1

</llo_original>
